<compile_context>
chip_gen: v6e
topology: v6e:2x2x1
jax: 0.10.0
libtpu: 0.0.40
codegen_flags: <defaults>
</compile_context>

<pallas_src>
import functools

import jax
import jax.numpy as jnp
from jax.experimental import pallas as pl
from jax.experimental.pallas import tpu as pltpu


def _round_up(x, m):
    return (x + m - 1) // m * m


def rnn_chunk_kernel(pad_ref, pre_ref, whh_ref, h_ref, *,
                     tc, unroll, mxu_dtype, has_remainder):
    """One (batch-tile, time-chunk) grid step of the recurrence.

    pad_ref : SMEM (1,) int32  number of front-padded (skipped) steps in chunk 0
    pre_ref : (tc, Bt, Hp)     precomputed x@W_ih^T + (b_ih+b_hh) for this chunk
    whh_ref : (Hp, Hp)         W_hh^T, single-buffered, resident across the grid
    h_ref   : (Bt, Hp) f32     hidden state; constant out-index along the time
                               axis -> resident VMEM accumulator per batch tile
    """
    c = pl.program_id(1)            # time-chunk index (serial axis)
    w_hh = whh_ref[...]             # already in mxu_dtype (bf16 or f32)

    def step(t, h):
        pre_t = pre_ref[t].astype(jnp.float32)
        hm = h.astype(mxu_dtype)
        return jnp.tanh(
            pre_t + jnp.dot(hm, w_hh, preferred_element_type=jnp.float32))

    @pl.when(c == 0)
    def _():
        h0 = jnp.zeros_like(h_ref[...])
        if has_remainder:
            # Skip the invalid (front-padded) steps of the first chunk.
            # Dynamic lower bound -> no unroll, but only for this one chunk.
            h_ref[...] = jax.lax.fori_loop(pad_ref[0], tc, step, h0)
        else:
            h_ref[...] = jax.lax.fori_loop(0, tc, step, h0, unroll=unroll)

    @pl.when(c > 0)
    def _():
        h_ref[...] = jax.lax.fori_loop(0, tc, step, h_ref[...], unroll=unroll)


def rnn_forward(tokens, params, *, time_chunk=64,
                pre_dtype=jnp.bfloat16, mxu_dtype=jnp.bfloat16,
                vmem_budget_bytes=32 << 20, batch_split_threshold=64,
                unroll=8):
    """tokens: (B, T) int32.  Returns (B, output_size) float32."""
    emb_table = params["embedding"]          # (V, D)
    w_ih_t = params["w_ih_t"]                # (D, H)
    w_hh_t = params["w_hh_t"]                # (H, H)
    b_ih = params["b_ih"]                    # (1, H)
    b_hh = params["b_hh"]                    # (1, H)
    w_fc_t = params["w_fc_t"]                # (H, O)
    b_fc = params["b_fc"]                    # (1, O)

    B, T = tokens.shape
    H = w_hh_t.shape[0]

    h_pad = _round_up(H, 128)                # lane multiple
    b_pad = _round_up(B, 8)                  # f32 sublane multiple

    # Batch tiling: split into 2 tiles once the batch is large enough to
    # amortize per-tile overhead -> both v7x TensorCores used, per-core VMEM
    # for pre/h halved.  Small batches stay in a single tile.
    if b_pad >= batch_split_threshold:
        num_b_tiles = 2
        bt = _round_up(-(-b_pad // 2), 8)
        b_pad = bt * num_b_tiles
    else:
        num_b_tiles = 1
        bt = b_pad

    pre_bytes = jnp.dtype(pre_dtype).itemsize
    whh_bytes = jnp.dtype(mxu_dtype).itemsize

    # --- VMEM-budgeted time chunk --------------------------------------------
    # resident: W_hh (single buffer) + h accumulator (2 bufs, f32)
    # streamed: pre chunk, double-buffered.
    fixed_bytes = h_pad * h_pad * whh_bytes + 2 * bt * h_pad * 4
    per_step_bytes = 2 * bt * h_pad * pre_bytes
    avail = max(vmem_budget_bytes - fixed_bytes, per_step_bytes)
    tc_cap = max(1, avail // per_step_bytes)
    tc = int(max(1, min(time_chunk, tc_cap, T)))

    t_pad = _round_up(T, tc)
    num_chunks = t_pad // tc
    pad_steps = t_pad - T
    has_remainder = pad_steps > 0

    # --- Hoist the input projection out of the serial recurrence (XLA GEMM) --
    proj = emb_table @ w_ih_t + (b_ih + b_hh)                       # (V, H) f32
    proj = jnp.pad(proj, ((0, 0), (0, h_pad - H))).astype(pre_dtype)  # (V, Hp)

    # Gather directly in time-major layout; pad the (tiny) token matrix rather
    # than the (T, B, Hp) activations.  Front time-padding uses token 0 and the
    # kernel skips those steps via the scalar-prefetched pad count.
    tokens_p = tokens
    if b_pad != B:
        tokens_p = jnp.pad(tokens_p, ((0, b_pad - B), (0, 0)))
    if pad_steps:
        tokens_p = jnp.pad(tokens_p, ((0, 0), (pad_steps, 0)))
    pre = jnp.take(proj, tokens_p.T, axis=0)            # (Tp, Bp, Hp) pre_dtype

    w_hh_p = jnp.pad(w_hh_t, ((0, h_pad - H), (0, h_pad - H))).astype(mxu_dtype)

    pad_arr = jnp.array([pad_steps], dtype=jnp.int32)

    # Explicit scoped-VMEM limit: actual usage + headroom, capped for v7x.
    usage = fixed_bytes + tc * per_step_bytes
    vmem_limit = int(min(max(int(usage * 1.25) + (2 << 20), 16 << 20), 60 << 20))

    kernel = functools.partial(
        rnn_chunk_kernel, tc=tc, unroll=int(min(unroll, tc)),
        mxu_dtype=mxu_dtype, has_remainder=has_remainder)

    h_last = pl.pallas_call(
        kernel,
        out_shape=jax.ShapeDtypeStruct((b_pad, h_pad), jnp.float32),
        grid_spec=pltpu.PrefetchScalarGridSpec(
            num_scalar_prefetch=1,                       # pad_steps -> SMEM
            grid=(num_b_tiles, num_chunks),
            in_specs=[
                # pre chunk, streamed / double-buffered
                pl.BlockSpec((tc, bt, h_pad), lambda b, c, pad: (c, b, 0)),
                # W_hh^T: constant index -> single-buffer it (saves Hp^2 bytes)
                pl.BlockSpec((h_pad, h_pad), lambda b, c, pad: (0, 0),
                             pipeline_mode=pl.Buffered(1)),
            ],
            out_specs=pl.BlockSpec((bt, h_pad), lambda b, c, pad: (b, 0)),
        ),
        compiler_params=pltpu.CompilerParams(
            dimension_semantics=("parallel", "arbitrary"),  # batch ∥, time serial
            vmem_limit_bytes=vmem_limit),
    )(pad_arr, pre, w_hh_p)

    # Final Linear on the last hidden state: tiny & lane-sparse (O=8) -> XLA.
    h_last = h_last[:B, :H].astype(jnp.float32)
    return h_last @ w_fc_t + b_fc


def make_params(key, voc_size, input_size, hidden_size, output_size):
    k_emb, k_wih, k_whh, k_wfc, k_bfc = jax.random.split(key, 5)

    def xavier_uniform(k, shape):
        fan_out, fan_in = shape
        bound = jnp.sqrt(6.0 / (fan_in + fan_out))
        return jax.random.uniform(k, shape, jnp.float32, -bound, bound)

    # nn.Embedding default init: N(0, 1)
    embedding = jax.random.normal(k_emb, (voc_size, input_size), jnp.float32)

    # nn.RNN weights: xavier_uniform_ (per the module __init__), biases zero.
    w_ih = xavier_uniform(k_wih, (hidden_size, input_size))   # (H, D)
    w_hh = xavier_uniform(k_whh, (hidden_size, hidden_size))  # (H, H)
    b_ih = jnp.zeros((1, hidden_size), jnp.float32)
    b_hh = jnp.zeros((1, hidden_size), jnp.float32)

    # nn.Linear default init: U(-1/sqrt(H), 1/sqrt(H))
    bound = 1.0 / jnp.sqrt(hidden_size)
    w_fc = jax.random.uniform(k_wfc, (output_size, hidden_size),
                              jnp.float32, -bound, bound)
    b_fc = jax.random.uniform(k_bfc, (1, output_size),
                              jnp.float32, -bound, bound)

    return {
        "embedding": embedding,
        "w_ih_t": w_ih.T,      # (D, H)
        "w_hh_t": w_hh.T,      # (H, H)
        "b_ih": b_ih,
        "b_hh": b_hh,
        "w_fc_t": w_fc.T,      # (H, O)
        "b_fc": b_fc,
    }


def rnn_reference(tokens, params):
    """Pure-JAX reference of the PyTorch forward, for sanity checking."""
    embedded = jnp.take(params["embedding"], tokens, axis=0)  # (B, T, D)
    B, T, D = embedded.shape
    H = params["w_hh_t"].shape[0]
    h = jnp.zeros((B, H), jnp.float32)
    for t in range(T):
        h = jnp.tanh(embedded[:, t, :] @ params["w_ih_t"]
                     + h @ params["w_hh_t"]
                     + params["b_ih"] + params["b_hh"])
    return h @ params["w_fc_t"] + params["b_fc"]


if __name__ == "__main__":
    voc_size, input_size, hidden_size, output_size = 32, 16, 32, 8
    B, T = 2, 8

    key = jax.random.PRNGKey(0)
    k_params, k_tok = jax.random.split(key)
    params = make_params(k_params, voc_size, input_size, hidden_size, output_size)
    tokens = jax.random.randint(k_tok, (B, T), 0, voc_size, dtype=jnp.int32)

    ref = rnn_reference(tokens, params)

    # 1) Exact config (f32 pre stream, f32 MXU operands): tight numerical check.
    out_exact = jax.block_until_ready(
        rnn_forward(tokens, params,
                    pre_dtype=jnp.float32, mxu_dtype=jnp.float32))
    assert out_exact.shape == (B, output_size)
    assert jnp.allclose(out_exact, ref, atol=1e-4, rtol=1e-4)

    # 2) Fast config (default: bf16 pre stream + bf16 MXU operands, f32 accum).
    out_fast = jax.block_until_ready(rnn_forward(tokens, params))
    assert out_fast.shape == (B, output_size)
    assert jnp.allclose(out_fast, ref, atol=5e-2, rtol=0.0)

    # 3) Remainder chunk (tc does not divide T) + forced 2-way batch split:
    #    exercises the scalar-prefetch skip path and the ("parallel",
    #    "arbitrary") two-axis grid used on v7x.
    out_tail = jax.block_until_ready(
        rnn_forward(tokens, params,
                    pre_dtype=jnp.float32, mxu_dtype=jnp.float32,
                    time_chunk=5, batch_split_threshold=8))
    assert jnp.allclose(out_tail, ref, atol=1e-4, rtol=1e-4)

    print("KERNEL_OK")
</pallas_src>

<mosaic_0001>
module attributes {stable_mosaic.version = 11 : i64} {
  func.func @rnn_chunk_kernel(%arg0: i32, %arg1: i32, %arg2: memref<1xi32, #tpu.memory_space<smem>>, %arg3: memref<8x8x128xf32, #tpu.memory_space<vmem>>, %arg4: memref<128x128xf32, #tpu.memory_space<vmem>>, %arg5: memref<8x128xf32, #tpu.memory_space<vmem>>) attributes {dimension_semantics = [#tpu.dimension_semantics<parallel>, #tpu.dimension_semantics<arbitrary>], iteration_bounds = array<i64: 1, 1>, scalar_prefetch = 1 : i64, scratch_operands = 0 : i64, tpu.core_type = #tpu.core_type<tc>, window_params = [{transform_indices = @transform_0, window_bounds = array<i64: 8, 8, 128>}, {pipeline_mode = #tpu.pipeline_mode<synchronous>, transform_indices = @transform_1, window_bounds = array<i64: 128, 128>}, {transform_indices = @transform_2, window_bounds = array<i64: 8, 128>}]} {
    %c0 = arith.constant 0 : index
    %c0_0 = arith.constant 0 : index
    %0 = vector.load %arg4[%c0, %c0_0] : memref<128x128xf32, #tpu.memory_space<vmem>>, vector<128x128xf32>
    %c0_i32 = arith.constant 0 : i32
    %1 = arith.cmpi eq, %arg1, %c0_i32 : i32
    %2 = arith.extui %1 : i1 to i32
    %c0_i32_1 = arith.constant 0 : i32
    %3 = arith.cmpi ne, %2, %c0_i32_1 : i32
    scf.if %3 {
      %cst = arith.constant 0.000000e+00 : f32
      %7 = vector.broadcast %cst : f32 to vector<8x128xf32>
      %c0_i32_4 = arith.constant 0 : i32
      %8 = arith.index_cast %c0_i32_4 : i32 to index
      %c0_5 = arith.constant 0 : index
      %c0_6 = arith.constant 0 : index
      %9 = vector.load %arg3[%8, %c0_5, %c0_6] : memref<8x8x128xf32, #tpu.memory_space<vmem>>, vector<1x8x128xf32>
      %10 = vector.shape_cast %9 : vector<1x8x128xf32> to vector<8x128xf32>
      %cst_7 = arith.constant dense<0.000000e+00> : vector<8x128xf32>
      %11 = tpu.matmul %7, %0, %cst_7 {dimension_numbers = #tpu.dot_dimension_numbers<[1], [0], [0], [1], [0, 0, 1, 1], [], []>} : vector<8x128xf32>, vector<128x128xf32>, vector<8x128xf32> -> vector<8x128xf32>
      %12 = arith.addf %10, %11 : vector<8x128xf32>
      %13 = math.tanh %12 : vector<8x128xf32>
      %c1_i32 = arith.constant 1 : i32
      %14 = arith.index_cast %c1_i32 : i32 to index
      %c0_8 = arith.constant 0 : index
      %c0_9 = arith.constant 0 : index
      %15 = vector.load %arg3[%14, %c0_8, %c0_9] : memref<8x8x128xf32, #tpu.memory_space<vmem>>, vector<1x8x128xf32>
      %16 = vector.shape_cast %15 : vector<1x8x128xf32> to vector<8x128xf32>
      %cst_10 = arith.constant dense<0.000000e+00> : vector<8x128xf32>
      %17 = tpu.matmul %13, %0, %cst_10 {dimension_numbers = #tpu.dot_dimension_numbers<[1], [0], [0], [1], [0, 0, 1, 1], [], []>} : vector<8x128xf32>, vector<128x128xf32>, vector<8x128xf32> -> vector<8x128xf32>
      %18 = arith.addf %16, %17 : vector<8x128xf32>
      %19 = math.tanh %18 : vector<8x128xf32>
      %c2_i32 = arith.constant 2 : i32
      %20 = arith.index_cast %c2_i32 : i32 to index
      %c0_11 = arith.constant 0 : index
      %c0_12 = arith.constant 0 : index
      %21 = vector.load %arg3[%20, %c0_11, %c0_12] : memref<8x8x128xf32, #tpu.memory_space<vmem>>, vector<1x8x128xf32>
      %22 = vector.shape_cast %21 : vector<1x8x128xf32> to vector<8x128xf32>
      %cst_13 = arith.constant dense<0.000000e+00> : vector<8x128xf32>
      %23 = tpu.matmul %19, %0, %cst_13 {dimension_numbers = #tpu.dot_dimension_numbers<[1], [0], [0], [1], [0, 0, 1, 1], [], []>} : vector<8x128xf32>, vector<128x128xf32>, vector<8x128xf32> -> vector<8x128xf32>
      %24 = arith.addf %22, %23 : vector<8x128xf32>
      %25 = math.tanh %24 : vector<8x128xf32>
      %c3_i32 = arith.constant 3 : i32
      %26 = arith.index_cast %c3_i32 : i32 to index
      %c0_14 = arith.constant 0 : index
      %c0_15 = arith.constant 0 : index
      %27 = vector.load %arg3[%26, %c0_14, %c0_15] : memref<8x8x128xf32, #tpu.memory_space<vmem>>, vector<1x8x128xf32>
      %28 = vector.shape_cast %27 : vector<1x8x128xf32> to vector<8x128xf32>
      %cst_16 = arith.constant dense<0.000000e+00> : vector<8x128xf32>
      %29 = tpu.matmul %25, %0, %cst_16 {dimension_numbers = #tpu.dot_dimension_numbers<[1], [0], [0], [1], [0, 0, 1, 1], [], []>} : vector<8x128xf32>, vector<128x128xf32>, vector<8x128xf32> -> vector<8x128xf32>
      %30 = arith.addf %28, %29 : vector<8x128xf32>
      %31 = math.tanh %30 : vector<8x128xf32>
      %c4_i32 = arith.constant 4 : i32
      %32 = arith.index_cast %c4_i32 : i32 to index
      %c0_17 = arith.constant 0 : index
      %c0_18 = arith.constant 0 : index
      %33 = vector.load %arg3[%32, %c0_17, %c0_18] : memref<8x8x128xf32, #tpu.memory_space<vmem>>, vector<1x8x128xf32>
      %34 = vector.shape_cast %33 : vector<1x8x128xf32> to vector<8x128xf32>
      %cst_19 = arith.constant dense<0.000000e+00> : vector<8x128xf32>
      %35 = tpu.matmul %31, %0, %cst_19 {dimension_numbers = #tpu.dot_dimension_numbers<[1], [0], [0], [1], [0, 0, 1, 1], [], []>} : vector<8x128xf32>, vector<128x128xf32>, vector<8x128xf32> -> vector<8x128xf32>
      %36 = arith.addf %34, %35 : vector<8x128xf32>
      %37 = math.tanh %36 : vector<8x128xf32>
      %c5_i32 = arith.constant 5 : i32
      %38 = arith.index_cast %c5_i32 : i32 to index
      %c0_20 = arith.constant 0 : index
      %c0_21 = arith.constant 0 : index
      %39 = vector.load %arg3[%38, %c0_20, %c0_21] : memref<8x8x128xf32, #tpu.memory_space<vmem>>, vector<1x8x128xf32>
      %40 = vector.shape_cast %39 : vector<1x8x128xf32> to vector<8x128xf32>
      %cst_22 = arith.constant dense<0.000000e+00> : vector<8x128xf32>
      %41 = tpu.matmul %37, %0, %cst_22 {dimension_numbers = #tpu.dot_dimension_numbers<[1], [0], [0], [1], [0, 0, 1, 1], [], []>} : vector<8x128xf32>, vector<128x128xf32>, vector<8x128xf32> -> vector<8x128xf32>
      %42 = arith.addf %40, %41 : vector<8x128xf32>
      %43 = math.tanh %42 : vector<8x128xf32>
      %c6_i32 = arith.constant 6 : i32
      %44 = arith.index_cast %c6_i32 : i32 to index
      %c0_23 = arith.constant 0 : index
      %c0_24 = arith.constant 0 : index
      %45 = vector.load %arg3[%44, %c0_23, %c0_24] : memref<8x8x128xf32, #tpu.memory_space<vmem>>, vector<1x8x128xf32>
      %46 = vector.shape_cast %45 : vector<1x8x128xf32> to vector<8x128xf32>
      %cst_25 = arith.constant dense<0.000000e+00> : vector<8x128xf32>
      %47 = tpu.matmul %43, %0, %cst_25 {dimension_numbers = #tpu.dot_dimension_numbers<[1], [0], [0], [1], [0, 0, 1, 1], [], []>} : vector<8x128xf32>, vector<128x128xf32>, vector<8x128xf32> -> vector<8x128xf32>
      %48 = arith.addf %46, %47 : vector<8x128xf32>
      %49 = math.tanh %48 : vector<8x128xf32>
      %c7_i32 = arith.constant 7 : i32
      %50 = arith.index_cast %c7_i32 : i32 to index
      %c0_26 = arith.constant 0 : index
      %c0_27 = arith.constant 0 : index
      %51 = vector.load %arg3[%50, %c0_26, %c0_27] : memref<8x8x128xf32, #tpu.memory_space<vmem>>, vector<1x8x128xf32>
      %52 = vector.shape_cast %51 : vector<1x8x128xf32> to vector<8x128xf32>
      %cst_28 = arith.constant dense<0.000000e+00> : vector<8x128xf32>
      %53 = tpu.matmul %49, %0, %cst_28 {dimension_numbers = #tpu.dot_dimension_numbers<[1], [0], [0], [1], [0, 0, 1, 1], [], []>} : vector<8x128xf32>, vector<128x128xf32>, vector<8x128xf32> -> vector<8x128xf32>
      %54 = arith.addf %52, %53 : vector<8x128xf32>
      %55 = math.tanh %54 : vector<8x128xf32>
      %c8_i32 = arith.constant 8 : i32
      %c0_29 = arith.constant 0 : index
      %c0_30 = arith.constant 0 : index
      %56 = vector.load %arg5[%c0_29, %c0_30] : memref<8x128xf32, #tpu.memory_space<vmem>>, vector<8x128xf32>
      tpu.vector_store %arg5[%c0_29, %c0_30], %55 {strides = array<i32>} : memref<8x128xf32, #tpu.memory_space<vmem>>, vector<8x128xf32>,
    } else {
    }
    %c0_i32_2 = arith.constant 0 : i32
    %4 = arith.cmpi sgt, %arg1, %c0_i32_2 : i32
    %5 = arith.extui %4 : i1 to i32
    %c0_i32_3 = arith.constant 0 : i32
    %6 = arith.cmpi ne, %5, %c0_i32_3 : i32
    scf.if %6 {
      %c0_4 = arith.constant 0 : index
      %c0_5 = arith.constant 0 : index
      %7 = vector.load %arg5[%c0_4, %c0_5] : memref<8x128xf32, #tpu.memory_space<vmem>>, vector<8x128xf32>
      %c0_i32_6 = arith.constant 0 : i32
      %8 = arith.index_cast %c0_i32_6 : i32 to index
      %c0_7 = arith.constant 0 : index
      %c0_8 = arith.constant 0 : index
      %9 = vector.load %arg3[%8, %c0_7, %c0_8] : memref<8x8x128xf32, #tpu.memory_space<vmem>>, vector<1x8x128xf32>
      %10 = vector.shape_cast %9 : vector<1x8x128xf32> to vector<8x128xf32>
      %cst = arith.constant dense<0.000000e+00> : vector<8x128xf32>
      %11 = tpu.matmul %7, %0, %cst {dimension_numbers = #tpu.dot_dimension_numbers<[1], [0], [0], [1], [0, 0, 1, 1], [], []>} : vector<8x128xf32>, vector<128x128xf32>, vector<8x128xf32> -> vector<8x128xf32>
      %12 = arith.addf %10, %11 : vector<8x128xf32>
      %13 = math.tanh %12 : vector<8x128xf32>
      %c1_i32 = arith.constant 1 : i32
      %14 = arith.index_cast %c1_i32 : i32 to index
      %c0_9 = arith.constant 0 : index
      %c0_10 = arith.constant 0 : index
      %15 = vector.load %arg3[%14, %c0_9, %c0_10] : memref<8x8x128xf32, #tpu.memory_space<vmem>>, vector<1x8x128xf32>
      %16 = vector.shape_cast %15 : vector<1x8x128xf32> to vector<8x128xf32>
      %cst_11 = arith.constant dense<0.000000e+00> : vector<8x128xf32>
      %17 = tpu.matmul %13, %0, %cst_11 {dimension_numbers = #tpu.dot_dimension_numbers<[1], [0], [0], [1], [0, 0, 1, 1], [], []>} : vector<8x128xf32>, vector<128x128xf32>, vector<8x128xf32> -> vector<8x128xf32>
      %18 = arith.addf %16, %17 : vector<8x128xf32>
      %19 = math.tanh %18 : vector<8x128xf32>
      %c2_i32 = arith.constant 2 : i32
      %20 = arith.index_cast %c2_i32 : i32 to index
      %c0_12 = arith.constant 0 : index
      %c0_13 = arith.constant 0 : index
      %21 = vector.load %arg3[%20, %c0_12, %c0_13] : memref<8x8x128xf32, #tpu.memory_space<vmem>>, vector<1x8x128xf32>
      %22 = vector.shape_cast %21 : vector<1x8x128xf32> to vector<8x128xf32>
      %cst_14 = arith.constant dense<0.000000e+00> : vector<8x128xf32>
      %23 = tpu.matmul %19, %0, %cst_14 {dimension_numbers = #tpu.dot_dimension_numbers<[1], [0], [0], [1], [0, 0, 1, 1], [], []>} : vector<8x128xf32>, vector<128x128xf32>, vector<8x128xf32> -> vector<8x128xf32>
      %24 = arith.addf %22, %23 : vector<8x128xf32>
      %25 = math.tanh %24 : vector<8x128xf32>
      %c3_i32 = arith.constant 3 : i32
      %26 = arith.index_cast %c3_i32 : i32 to index
      %c0_15 = arith.constant 0 : index
      %c0_16 = arith.constant 0 : index
      %27 = vector.load %arg3[%26, %c0_15, %c0_16] : memref<8x8x128xf32, #tpu.memory_space<vmem>>, vector<1x8x128xf32>
      %28 = vector.shape_cast %27 : vector<1x8x128xf32> to vector<8x128xf32>
      %cst_17 = arith.constant dense<0.000000e+00> : vector<8x128xf32>
      %29 = tpu.matmul %25, %0, %cst_17 {dimension_numbers = #tpu.dot_dimension_numbers<[1], [0], [0], [1], [0, 0, 1, 1], [], []>} : vector<8x128xf32>, vector<128x128xf32>, vector<8x128xf32> -> vector<8x128xf32>
      %30 = arith.addf %28, %29 : vector<8x128xf32>
      %31 = math.tanh %30 : vector<8x128xf32>
      %c4_i32 = arith.constant 4 : i32
      %32 = arith.index_cast %c4_i32 : i32 to index
      %c0_18 = arith.constant 0 : index
      %c0_19 = arith.constant 0 : index
      %33 = vector.load %arg3[%32, %c0_18, %c0_19] : memref<8x8x128xf32, #tpu.memory_space<vmem>>, vector<1x8x128xf32>
      %34 = vector.shape_cast %33 : vector<1x8x128xf32> to vector<8x128xf32>
      %cst_20 = arith.constant dense<0.000000e+00> : vector<8x128xf32>
      %35 = tpu.matmul %31, %0, %cst_20 {dimension_numbers = #tpu.dot_dimension_numbers<[1], [0], [0], [1], [0, 0, 1, 1], [], []>} : vector<8x128xf32>, vector<128x128xf32>, vector<8x128xf32> -> vector<8x128xf32>
      %36 = arith.addf %34, %35 : vector<8x128xf32>
      %37 = math.tanh %36 : vector<8x128xf32>
      %c5_i32 = arith.constant 5 : i32
      %38 = arith.index_cast %c5_i32 : i32 to index
      %c0_21 = arith.constant 0 : index
      %c0_22 = arith.constant 0 : index
      %39 = vector.load %arg3[%38, %c0_21, %c0_22] : memref<8x8x128xf32, #tpu.memory_space<vmem>>, vector<1x8x128xf32>
      %40 = vector.shape_cast %39 : vector<1x8x128xf32> to vector<8x128xf32>
      %cst_23 = arith.constant dense<0.000000e+00> : vector<8x128xf32>
      %41 = tpu.matmul %37, %0, %cst_23 {dimension_numbers = #tpu.dot_dimension_numbers<[1], [0], [0], [1], [0, 0, 1, 1], [], []>} : vector<8x128xf32>, vector<128x128xf32>, vector<8x128xf32> -> vector<8x128xf32>
      %42 = arith.addf %40, %41 : vector<8x128xf32>
      %43 = math.tanh %42 : vector<8x128xf32>
      %c6_i32 = arith.constant 6 : i32
      %44 = arith.index_cast %c6_i32 : i32 to index
      %c0_24 = arith.constant 0 : index
      %c0_25 = arith.constant 0 : index
      %45 = vector.load %arg3[%44, %c0_24, %c0_25] : memref<8x8x128xf32, #tpu.memory_space<vmem>>, vector<1x8x128xf32>
      %46 = vector.shape_cast %45 : vector<1x8x128xf32> to vector<8x128xf32>
      %cst_26 = arith.constant dense<0.000000e+00> : vector<8x128xf32>
      %47 = tpu.matmul %43, %0, %cst_26 {dimension_numbers = #tpu.dot_dimension_numbers<[1], [0], [0], [1], [0, 0, 1, 1], [], []>} : vector<8x128xf32>, vector<128x128xf32>, vector<8x128xf32> -> vector<8x128xf32>
      %48 = arith.addf %46, %47 : vector<8x128xf32>
      %49 = math.tanh %48 : vector<8x128xf32>
      %c7_i32 = arith.constant 7 : i32
      %50 = arith.index_cast %c7_i32 : i32 to index
      %c0_27 = arith.constant 0 : index
      %c0_28 = arith.constant 0 : index
      %51 = vector.load %arg3[%50, %c0_27, %c0_28] : memref<8x8x128xf32, #tpu.memory_space<vmem>>, vector<1x8x128xf32>
      %52 = vector.shape_cast %51 : vector<1x8x128xf32> to vector<8x128xf32>
      %cst_29 = arith.constant dense<0.000000e+00> : vector<8x128xf32>
      %53 = tpu.matmul %49, %0, %cst_29 {dimension_numbers = #tpu.dot_dimension_numbers<[1], [0], [0], [1], [0, 0, 1, 1], [], []>} : vector<8x128xf32>, vector<128x128xf32>, vector<8x128xf32> -> vector<8x128xf32>
      %54 = arith.addf %52, %53 : vector<8x128xf32>
      %55 = math.tanh %54 : vector<8x128xf32>
      %c8_i32 = arith.constant 8 : i32
      %c0_30 = arith.constant 0 : index
      %c0_31 = arith.constant 0 : index
      %56 = vector.load %arg5[%c0_30, %c0_31] : memref<8x128xf32, #tpu.memory_space<vmem>>, vector<8x128xf32>
      tpu.vector_store %arg5[%c0_30, %c0_31], %55 {strides = array<i32>} : memref<8x128xf32, #tpu.memory_space<vmem>>, vector<8x128xf32>,
    } else {
    }
    return
  }
  func.func @transform_0(%arg0: i32, %arg1: i32, %arg2: memref<1xi32, #tpu.memory_space<smem>>) -> (i32, i32, i32) {
    %c0_i32 = arith.constant 0 : i32
    %c0_i32_0 = arith.constant 0 : i32
    return %arg1, %arg0, %c0_i32 : i32, i32, i32
  }
  func.func @transform_1(%arg0: i32, %arg1: i32, %arg2: memref<1xi32, #tpu.memory_space<smem>>) -> (i32, i32) {
    %c0_i32 = arith.constant 0 : i32
    %c0_i32_0 = arith.constant 0 : i32
    %c0_i32_1 = arith.constant 0 : i32
    return %c0_i32, %c0_i32_0 : i32, i32
  }
  func.func @transform_2(%arg0: i32, %arg1: i32, %arg2: memref<1xi32, #tpu.memory_space<smem>>) -> (i32, i32) {
    %c0_i32 = arith.constant 0 : i32
    %c0_i32_0 = arith.constant 0 : i32
    return %arg0, %c0_i32 : i32, i32
  }
}

</mosaic_0001>

<llo_original>
// kernel: tpu_custom_call.1
$region0: #{tpu_custom_call.1}
  #allocation0 [shape = 'u32[]', space=smem, size = 0x4, offset = 0x4, fixed_abs, tag = 'smem constant byte address 0x4 - core index']
  #allocation1 [shape = 'u32[144,128]{1,0:T(1,128)}', space=vmem, size = 0x12000, scoped, tag = 'internal scratch']
  #allocation2 [shape = 's32[1]{0}', space=sflag, size = 0x4, scoped, tag = 'scoped memory for tpu_custom_call.1']
  #allocation3 [shape = 's32[1]{0:T(128)S(6)}', space=smem, size = 0x200, scoped, tag = 'prefetched SMEM operand 0']
  %s0 = inlined_call_operand.<no memory space> [shape: s32[1], index: 0, kind: input, shape index: {}]
  %s1 = inlined_call_operand.hbm [shape: f32[8,8,128], index: 1, kind: input, shape index: {}]
  %s2 = inlined_call_operand.hbm [shape: f32[128,128], index: 2, kind: input, shape index: {}]
  %s3 = inlined_call_operand.hbm [shape: f32[8,128], index: 3, kind: output, shape index: {}]
  %s4 = sld [smem:[#allocation0]]
  $region34: #{tpu_custom_call.1} parent=0
    _
  %s6 = ssub.s32 1, %s4
  %s7 = scalar_select 0, %s6, %s4
  %8 = sst [smem:[#allocation3]] %s0
  $region1: #{tpu_custom_call.1} parent=0
    #allocation4 [shape = 'u8[32768]{0}', space=vmem, size = 0x8000, scoped, tag = 'input window, operand 1, single buffered']
    #allocation5 [shape = 's32[1]{0}', space=sflag, size = 0x4, scoped, tag = 'scoped memory for tpu_custom_call.1']
    #allocation6 [shape = 's32[1]{0}', space=sflag, size = 0x4, scoped, tag = 'scoped memory for tpu_custom_call.1']
    #allocation7 [shape = 'u8[65536]{0}', space=vmem, size = 0x10000, scoped, tag = 'input window, operand 2, single buffered']
    #allocation8 [shape = 's32[1]{0}', space=sflag, size = 0x4, scoped, tag = 'scoped memory for tpu_custom_call.1']
    #allocation9 [shape = 'u8[4096]{0}', space=vmem, size = 0x1000, scoped, tag = 'output window, operand 0, single buffered']
    %9 = vsyncpa [#allocation5], 0
    %10 = vsyncpa [#allocation8], 0
    %11 = vsyncpa [#allocation6], 0
    // Predicated region
    $region2: #{tpu_custom_call.1} parent=1 // pred_check
      _
    $region3: #{tpu_custom_call.1} parent=1 // pred_check_branch
      %13 = sbr.rel (0) target = $region5
    $region4: #{tpu_custom_call.1} parent=1 // pred_region
      %s15 = ssub.s32 1024, 1024
      %16 = vsyncadd [#allocation5], %s15
      %s17 = sshll.u32 [#allocation4], 4
      %s18 = int_to_ptr.vmem [resolvable:$true] %s17
      %23 = dma.hbm_to_vmem [thread:$0]  %s1, 1024, %s18, [#allocation5], 128, 128, 8
    $region5: #{tpu_custom_call.1} parent=1 // pred_fallthru
      _
    // Predicated region
    $region6: #{tpu_custom_call.1} parent=1 // pred_check
      _
    $region7: #{tpu_custom_call.1} parent=1 // pred_check_branch
      %25 = sbr.rel (0) target = $region9
    $region8: #{tpu_custom_call.1} parent=1 // pred_region
      %s27 = ssub.s32 2048, 2048
      %28 = vsyncadd [#allocation8], %s27
      %s29 = sshll.u32 [#allocation7], 4
      %s30 = int_to_ptr.vmem [resolvable:$true] %s29
      %35 = dma.hbm_to_vmem [thread:$0]  %s2, 2048, %s30, [#allocation8], 128, 128, 8
    $region9: #{tpu_custom_call.1} parent=1 // pred_fallthru
      _
    // Predicated region
    $region10: #{tpu_custom_call.1} parent=1 // pred_check
      _
    $region11: #{tpu_custom_call.1} parent=1 // pred_check_branch
      %37 = sbr.rel (0) target = $region13
    $region12: #{tpu_custom_call.1} parent=1 // pred_region
      %38 = dma.done [#allocation5], 1024
    $region13: #{tpu_custom_call.1} parent=1 // pred_fallthru
      _
    // Predicated region
    $region14: #{tpu_custom_call.1} parent=1 // pred_check
      _
    $region15: #{tpu_custom_call.1} parent=1 // pred_check_branch
      %40 = sbr.rel (0) target = $region17
    $region16: #{tpu_custom_call.1} parent=1 // pred_region
      %41 = dma.done [#allocation8], 2048
    $region17: #{tpu_custom_call.1} parent=1 // pred_fallthru
      _
    %v42 = vld [vmem:[#allocation7] sm:$0xff]
    %v43 = vld [vmem:[#allocation7 + $0x8] sm:$0xff]
    %v44 = vld [vmem:[#allocation7 + $0x10] sm:$0xff]
    %v45 = vld [vmem:[#allocation7 + $0x18] sm:$0xff]
    %v46 = vld [vmem:[#allocation7 + $0x20] sm:$0xff]
    %v47 = vld [vmem:[#allocation7 + $0x28] sm:$0xff]
    %v48 = vld [vmem:[#allocation7 + $0x30] sm:$0xff]
    %v49 = vld [vmem:[#allocation7 + $0x38] sm:$0xff]
    %v50 = vld [vmem:[#allocation7 + $0x40] sm:$0xff]
    %v51 = vld [vmem:[#allocation7 + $0x48] sm:$0xff]
    %v52 = vld [vmem:[#allocation7 + $0x50] sm:$0xff]
    %v53 = vld [vmem:[#allocation7 + $0x58] sm:$0xff]
    %v54 = vld [vmem:[#allocation7 + $0x60] sm:$0xff]
    %v55 = vld [vmem:[#allocation7 + $0x68] sm:$0xff]
    %v56 = vld [vmem:[#allocation7 + $0x70] sm:$0xff]
    %v57 = vld [vmem:[#allocation7 + $0x78] sm:$0xff]
    %p58 = scmp.eq.s32.totalorder 0, 0
    // Predicated region
    $region18: #{tpu_custom_call.1} parent=1 // pred_check
      %p59 = pneg %p58
    $region19: #{tpu_custom_call.1} parent=1 // pred_check_branch
      %61 = sbr.rel (%p59) target = $region21
    $region20: #{tpu_custom_call.1} parent=1 // pred_region
      %v62 = vld [vmem:[#allocation4] sm:$0xff]
      %63 = vmatprep.subr.mxu0 0.0
      %64 = vmatpush1.msra.mxu0 %v57
      %65 = vmatprep.subr.mxu0 0.0
      %66 = vmatpush1.msra.mxu0 %v56
      %67 = vmatprep.subr.mxu0 0.0
      %68 = vmatpush1.msra.mxu0 %v55
      %69 = vmatprep.subr.mxu0 0.0
      %70 = vmatpush1.msra.mxu0 %v54
      %71 = vmatprep.subr.mxu0 0.0
      %72 = vmatpush1.msra.mxu0 %v53
      %73 = vmatprep.subr.mxu0 0.0
      %74 = vmatpush1.msra.mxu0 %v52
      %75 = vmatprep.subr.mxu0 0.0
      %76 = vmatpush1.msra.mxu0 %v51
      %77 = vmatprep.subr.mxu0 0.0
      %78 = vmatpush1.msra.mxu0 %v50
      %79 = vmatprep.subr.mxu0 0.0
      %80 = vmatpush1.msra.mxu0 %v49
      %81 = vmatprep.subr.mxu0 0.0
      %82 = vmatpush1.msra.mxu0 %v48
      %83 = vmatprep.subr.mxu0 0.0
      %84 = vmatpush1.msra.mxu0 %v47
      %85 = vmatprep.subr.mxu0 0.0
      %86 = vmatpush1.msra.mxu0 %v46
      %87 = vmatprep.subr.mxu0 0.0
      %88 = vmatpush1.msra.mxu0 %v45
      %89 = vmatprep.subr.mxu0 0.0
      %90 = vmatpush1.msra.mxu0 %v44
      %91 = vmatprep.subr.mxu0 0.0
      %92 = vmatpush1.msra.mxu0 %v43
      %93 = vmatprep.subr.mxu0 0.0
      %94 = vmatpush1.msra.mxu0 %v42
      %95 = vmatprep.subr.mxu0 0.0
      %96 = vmatpush2.msra.mxu0 0.0
      %97 = vmatprep.subr.mxu0 0.0
      %98 = vmatpush2.msra.mxu0 0.0
      %99 = vmatprep.subr.mxu0 0.0
      %100 = vmatpush2.msra.mxu0 0.0
      %101 = vmatprep.subr.mxu0 0.0
      %102 = vmatpush2.msra.mxu0 0.0
      %103 = vmatprep.subr.mxu0 0.0
      %104 = vmatpush2.msra.mxu0 0.0
      %105 = vmatprep.subr.mxu0 0.0
      %106 = vmatpush2.msra.mxu0 0.0
      %107 = vmatprep.subr.mxu0 0.0
      %108 = vmatpush2.msra.mxu0 0.0
      %109 = vmatprep.subr.mxu0 0.0
      %110 = vmatpush2.msra.mxu0 0.0
      %111 = vmatprep.subr.mxu0 0.0
      %112 = vmatpush2.msra.mxu0 0.0
      %113 = vmatprep.subr.mxu0 0.0
      %114 = vmatpush2.msra.mxu0 0.0
      %115 = vmatprep.subr.mxu0 0.0
      %116 = vmatpush2.msra.mxu0 0.0
      %117 = vmatprep.subr.mxu0 0.0
      %118 = vmatpush2.msra.mxu0 0.0
      %119 = vmatprep.subr.mxu0 0.0
      %120 = vmatpush2.msra.mxu0 0.0
      %121 = vmatprep.subr.mxu0 0.0
      %122 = vmatpush2.msra.mxu0 0.0
      %123 = vmatprep.subr.mxu0 0.0
      %124 = vmatpush2.msra.mxu0 0.0
      %125 = vmatprep.subr.mxu0 0.0
      %126 = vmatpush2.msra.mxu0 0.0
      %127 = vmatprep.mubr.f32.mxu0 0.0
      %128 = vmatmul.mubr.f32.gmra.mxu0 0.0
      %v129 = vpop.f32.mrf.mxu0
      %v130 = vadd.f32 0.0, %v129
      %v131 = vpop.f32.mrf.mxu0
      %132 = vdwg.mxu0
      %v133 = vadd.f32 %v62, %v130
      %v134 = vtanh.pop %v133
      %s135 = scalar_lea.vmem [#allocation4], 8
      %v136 = vld [vmem:[%s135] sm:$0xff]
      %137 = vmatprep.subr.mxu0 0.0
      %138 = vmatpush1.msra.mxu0 %v57
      %139 = vmatprep.subr.mxu0 0.0
      %140 = vmatpush1.msra.mxu0 %v56
      %141 = vmatprep.subr.mxu0 0.0
      %142 = vmatpush1.msra.mxu0 %v55
      %143 = vmatprep.subr.mxu0 0.0
      %144 = vmatpush1.msra.mxu0 %v54
      %145 = vmatprep.subr.mxu0 0.0
      %146 = vmatpush1.msra.mxu0 %v53
      %147 = vmatprep.subr.mxu0 0.0
      %148 = vmatpush1.msra.mxu0 %v52
      %149 = vmatprep.subr.mxu0 0.0
      %150 = vmatpush1.msra.mxu0 %v51
      %151 = vmatprep.subr.mxu0 0.0
      %152 = vmatpush1.msra.mxu0 %v50
      %153 = vmatprep.subr.mxu0 0.0
      %154 = vmatpush1.msra.mxu0 %v49
      %155 = vmatprep.subr.mxu0 0.0
      %156 = vmatpush1.msra.mxu0 %v48
      %157 = vmatprep.subr.mxu0 0.0
      %158 = vmatpush1.msra.mxu0 %v47
      %159 = vmatprep.subr.mxu0 0.0
      %160 = vmatpush1.msra.mxu0 %v46
      %161 = vmatprep.subr.mxu0 0.0
      %162 = vmatpush1.msra.mxu0 %v45
      %163 = vmatprep.subr.mxu0 0.0
      %164 = vmatpush1.msra.mxu0 %v44
      %165 = vmatprep.subr.mxu0 0.0
      %166 = vmatpush1.msra.mxu0 %v43
      %167 = vmatprep.subr.mxu0 0.0
      %168 = vmatpush1.msra.mxu0 %v42
      %169 = vmatprep.subr.mxu0 0.0
      %170 = vmatpush2.msra.mxu0 0.0
      %171 = vmatprep.subr.mxu0 0.0
      %172 = vmatpush2.msra.mxu0 0.0
      %173 = vmatprep.subr.mxu0 0.0
      %174 = vmatpush2.msra.mxu0 0.0
      %175 = vmatprep.subr.mxu0 0.0
      %176 = vmatpush2.msra.mxu0 0.0
      %177 = vmatprep.subr.mxu0 0.0
      %178 = vmatpush2.msra.mxu0 0.0
      %179 = vmatprep.subr.mxu0 0.0
      %180 = vmatpush2.msra.mxu0 0.0
      %181 = vmatprep.subr.mxu0 0.0
      %182 = vmatpush2.msra.mxu0 0.0
      %183 = vmatprep.subr.mxu0 0.0
      %184 = vmatpush2.msra.mxu0 0.0
      %185 = vmatprep.subr.mxu0 0.0
      %186 = vmatpush2.msra.mxu0 0.0
      %187 = vmatprep.subr.mxu0 0.0
      %188 = vmatpush2.msra.mxu0 0.0
      %189 = vmatprep.subr.mxu0 0.0
      %190 = vmatpush2.msra.mxu0 0.0
      %191 = vmatprep.subr.mxu0 0.0
      %192 = vmatpush2.msra.mxu0 0.0
      %193 = vmatprep.subr.mxu0 0.0
      %194 = vmatpush2.msra.mxu0 0.0
      %195 = vmatprep.subr.mxu0 0.0
      %196 = vmatpush2.msra.mxu0 0.0
      %197 = vmatprep.subr.mxu0 0.0
      %198 = vmatpush2.msra.mxu0 0.0
      %199 = vmatprep.subr.mxu0 0.0
      %200 = vmatpush2.msra.mxu0 0.0
      %201 = vmatprep.mubr.f32.mxu0 0.0
      %202 = vmatmul.mubr.f32.gmra.mxu0 %v134
      %v203 = vpop.f32.mrf.mxu0
      %v204 = vadd.f32 0.0, %v203
      %v205 = vpop.f32.mrf.mxu0
      %206 = vdwg.mxu0
      %v207 = vadd.f32 %v136, %v204
      %v208 = vtanh.pop %v207
      %s209 = scalar_lea.vmem [#allocation4], 16
      %v210 = vld [vmem:[%s209] sm:$0xff]
      %211 = vmatprep.subr.mxu0 0.0
      %212 = vmatpush1.msra.mxu0 %v57
      %213 = vmatprep.subr.mxu0 0.0
      %214 = vmatpush1.msra.mxu0 %v56
      %215 = vmatprep.subr.mxu0 0.0
      %216 = vmatpush1.msra.mxu0 %v55
      %217 = vmatprep.subr.mxu0 0.0
      %218 = vmatpush1.msra.mxu0 %v54
      %219 = vmatprep.subr.mxu0 0.0
      %220 = vmatpush1.msra.mxu0 %v53
      %221 = vmatprep.subr.mxu0 0.0
      %222 = vmatpush1.msra.mxu0 %v52
      %223 = vmatprep.subr.mxu0 0.0
      %224 = vmatpush1.msra.mxu0 %v51
      %225 = vmatprep.subr.mxu0 0.0
      %226 = vmatpush1.msra.mxu0 %v50
      %227 = vmatprep.subr.mxu0 0.0
      %228 = vmatpush1.msra.mxu0 %v49
      %229 = vmatprep.subr.mxu0 0.0
      %230 = vmatpush1.msra.mxu0 %v48
      %231 = vmatprep.subr.mxu0 0.0
      %232 = vmatpush1.msra.mxu0 %v47
      %233 = vmatprep.subr.mxu0 0.0
      %234 = vmatpush1.msra.mxu0 %v46
      %235 = vmatprep.subr.mxu0 0.0
      %236 = vmatpush1.msra.mxu0 %v45
      %237 = vmatprep.subr.mxu0 0.0
      %238 = vmatpush1.msra.mxu0 %v44
      %239 = vmatprep.subr.mxu0 0.0
      %240 = vmatpush1.msra.mxu0 %v43
      %241 = vmatprep.subr.mxu0 0.0
      %242 = vmatpush1.msra.mxu0 %v42
      %243 = vmatprep.subr.mxu0 0.0
      %244 = vmatpush2.msra.mxu0 0.0
      %245 = vmatprep.subr.mxu0 0.0
      %246 = vmatpush2.msra.mxu0 0.0
      %247 = vmatprep.subr.mxu0 0.0
      %248 = vmatpush2.msra.mxu0 0.0
      %249 = vmatprep.subr.mxu0 0.0
      %250 = vmatpush2.msra.mxu0 0.0
      %251 = vmatprep.subr.mxu0 0.0
      %252 = vmatpush2.msra.mxu0 0.0
      %253 = vmatprep.subr.mxu0 0.0
      %254 = vmatpush2.msra.mxu0 0.0
      %255 = vmatprep.subr.mxu0 0.0
      %256 = vmatpush2.msra.mxu0 0.0
      %257 = vmatprep.subr.mxu0 0.0
      %258 = vmatpush2.msra.mxu0 0.0
      %259 = vmatprep.subr.mxu0 0.0
      %260 = vmatpush2.msra.mxu0 0.0
      %261 = vmatprep.subr.mxu0 0.0
      %262 = vmatpush2.msra.mxu0 0.0
      %263 = vmatprep.subr.mxu0 0.0
      %264 = vmatpush2.msra.mxu0 0.0
      %265 = vmatprep.subr.mxu0 0.0
      %266 = vmatpush2.msra.mxu0 0.0
      %267 = vmatprep.subr.mxu0 0.0
      %268 = vmatpush2.msra.mxu0 0.0
      %269 = vmatprep.subr.mxu0 0.0
      %270 = vmatpush2.msra.mxu0 0.0
      %271 = vmatprep.subr.mxu0 0.0
      %272 = vmatpush2.msra.mxu0 0.0
      %273 = vmatprep.subr.mxu0 0.0
      %274 = vmatpush2.msra.mxu0 0.0
      %275 = vmatprep.mubr.f32.mxu0 0.0
      %276 = vmatmul.mubr.f32.gmra.mxu0 %v208
      %v277 = vpop.f32.mrf.mxu0
      %v278 = vadd.f32 0.0, %v277
      %v279 = vpop.f32.mrf.mxu0
      %280 = vdwg.mxu0
      %v281 = vadd.f32 %v210, %v278
      %v282 = vtanh.pop %v281
      %s283 = scalar_lea.vmem [#allocation4], 24
      %v284 = vld [vmem:[%s283] sm:$0xff]
      %285 = vmatprep.subr.mxu0 0.0
      %286 = vmatpush1.msra.mxu0 %v57
      %287 = vmatprep.subr.mxu0 0.0
      %288 = vmatpush1.msra.mxu0 %v56
      %289 = vmatprep.subr.mxu0 0.0
      %290 = vmatpush1.msra.mxu0 %v55
      %291 = vmatprep.subr.mxu0 0.0
      %292 = vmatpush1.msra.mxu0 %v54
      %293 = vmatprep.subr.mxu0 0.0
      %294 = vmatpush1.msra.mxu0 %v53
      %295 = vmatprep.subr.mxu0 0.0
      %296 = vmatpush1.msra.mxu0 %v52
      %297 = vmatprep.subr.mxu0 0.0
      %298 = vmatpush1.msra.mxu0 %v51
      %299 = vmatprep.subr.mxu0 0.0
      %300 = vmatpush1.msra.mxu0 %v50
      %301 = vmatprep.subr.mxu0 0.0
      %302 = vmatpush1.msra.mxu0 %v49
      %303 = vmatprep.subr.mxu0 0.0
      %304 = vmatpush1.msra.mxu0 %v48
      %305 = vmatprep.subr.mxu0 0.0
      %306 = vmatpush1.msra.mxu0 %v47
      %307 = vmatprep.subr.mxu0 0.0
      %308 = vmatpush1.msra.mxu0 %v46
      %309 = vmatprep.subr.mxu0 0.0
      %310 = vmatpush1.msra.mxu0 %v45
      %311 = vmatprep.subr.mxu0 0.0
      %312 = vmatpush1.msra.mxu0 %v44
      %313 = vmatprep.subr.mxu0 0.0
      %314 = vmatpush1.msra.mxu0 %v43
      %315 = vmatprep.subr.mxu0 0.0
      %316 = vmatpush1.msra.mxu0 %v42
      %317 = vmatprep.subr.mxu0 0.0
      %318 = vmatpush2.msra.mxu0 0.0
      %319 = vmatprep.subr.mxu0 0.0
      %320 = vmatpush2.msra.mxu0 0.0
      %321 = vmatprep.subr.mxu0 0.0
      %322 = vmatpush2.msra.mxu0 0.0
      %323 = vmatprep.subr.mxu0 0.0
      %324 = vmatpush2.msra.mxu0 0.0
      %325 = vmatprep.subr.mxu0 0.0
      %326 = vmatpush2.msra.mxu0 0.0
      %327 = vmatprep.subr.mxu0 0.0
      %328 = vmatpush2.msra.mxu0 0.0
      %329 = vmatprep.subr.mxu0 0.0
      %330 = vmatpush2.msra.mxu0 0.0
      %331 = vmatprep.subr.mxu0 0.0
      %332 = vmatpush2.msra.mxu0 0.0
      %333 = vmatprep.subr.mxu0 0.0
      %334 = vmatpush2.msra.mxu0 0.0
      %335 = vmatprep.subr.mxu0 0.0
      %336 = vmatpush2.msra.mxu0 0.0
      %337 = vmatprep.subr.mxu0 0.0
      %338 = vmatpush2.msra.mxu0 0.0
      %339 = vmatprep.subr.mxu0 0.0
      %340 = vmatpush2.msra.mxu0 0.0
      %341 = vmatprep.subr.mxu0 0.0
      %342 = vmatpush2.msra.mxu0 0.0
      %343 = vmatprep.subr.mxu0 0.0
      %344 = vmatpush2.msra.mxu0 0.0
      %345 = vmatprep.subr.mxu0 0.0
      %346 = vmatpush2.msra.mxu0 0.0
      %347 = vmatprep.subr.mxu0 0.0
      %348 = vmatpush2.msra.mxu0 0.0
      %349 = vmatprep.mubr.f32.mxu0 0.0
      %350 = vmatmul.mubr.f32.gmra.mxu0 %v282
      %v351 = vpop.f32.mrf.mxu0
      %v352 = vadd.f32 0.0, %v351
      %v353 = vpop.f32.mrf.mxu0
      %354 = vdwg.mxu0
      %v355 = vadd.f32 %v284, %v352
      %v356 = vtanh.pop %v355
      %s357 = scalar_lea.vmem [#allocation4], 32
      %v358 = vld [vmem:[%s357] sm:$0xff]
      %359 = vmatprep.subr.mxu0 0.0
      %360 = vmatpush1.msra.mxu0 %v57
      %361 = vmatprep.subr.mxu0 0.0
      %362 = vmatpush1.msra.mxu0 %v56
      %363 = vmatprep.subr.mxu0 0.0
      %364 = vmatpush1.msra.mxu0 %v55
      %365 = vmatprep.subr.mxu0 0.0
      %366 = vmatpush1.msra.mxu0 %v54
      %367 = vmatprep.subr.mxu0 0.0
      %368 = vmatpush1.msra.mxu0 %v53
      %369 = vmatprep.subr.mxu0 0.0
      %370 = vmatpush1.msra.mxu0 %v52
      %371 = vmatprep.subr.mxu0 0.0
      %372 = vmatpush1.msra.mxu0 %v51
      %373 = vmatprep.subr.mxu0 0.0
      %374 = vmatpush1.msra.mxu0 %v50
      %375 = vmatprep.subr.mxu0 0.0
      %376 = vmatpush1.msra.mxu0 %v49
      %377 = vmatprep.subr.mxu0 0.0
      %378 = vmatpush1.msra.mxu0 %v48
      %379 = vmatprep.subr.mxu0 0.0
      %380 = vmatpush1.msra.mxu0 %v47
      %381 = vmatprep.subr.mxu0 0.0
      %382 = vmatpush1.msra.mxu0 %v46
      %383 = vmatprep.subr.mxu0 0.0
      %384 = vmatpush1.msra.mxu0 %v45
      %385 = vmatprep.subr.mxu0 0.0
      %386 = vmatpush1.msra.mxu0 %v44
      %387 = vmatprep.subr.mxu0 0.0
      %388 = vmatpush1.msra.mxu0 %v43
      %389 = vmatprep.subr.mxu0 0.0
      %390 = vmatpush1.msra.mxu0 %v42
      %391 = vmatprep.subr.mxu0 0.0
      %392 = vmatpush2.msra.mxu0 0.0
      %393 = vmatprep.subr.mxu0 0.0
      %394 = vmatpush2.msra.mxu0 0.0
      %395 = vmatprep.subr.mxu0 0.0
      %396 = vmatpush2.msra.mxu0 0.0
      %397 = vmatprep.subr.mxu0 0.0
      %398 = vmatpush2.msra.mxu0 0.0
      %399 = vmatprep.subr.mxu0 0.0
      %400 = vmatpush2.msra.mxu0 0.0
      %401 = vmatprep.subr.mxu0 0.0
      %402 = vmatpush2.msra.mxu0 0.0
      %403 = vmatprep.subr.mxu0 0.0
      %404 = vmatpush2.msra.mxu0 0.0
      %405 = vmatprep.subr.mxu0 0.0
      %406 = vmatpush2.msra.mxu0 0.0
      %407 = vmatprep.subr.mxu0 0.0
      %408 = vmatpush2.msra.mxu0 0.0
      %409 = vmatprep.subr.mxu0 0.0
      %410 = vmatpush2.msra.mxu0 0.0
      %411 = vmatprep.subr.mxu0 0.0
      %412 = vmatpush2.msra.mxu0 0.0
      %413 = vmatprep.subr.mxu0 0.0
      %414 = vmatpush2.msra.mxu0 0.0
      %415 = vmatprep.subr.mxu0 0.0
      %416 = vmatpush2.msra.mxu0 0.0
      %417 = vmatprep.subr.mxu0 0.0
      %418 = vmatpush2.msra.mxu0 0.0
      %419 = vmatprep.subr.mxu0 0.0
      %420 = vmatpush2.msra.mxu0 0.0
      %421 = vmatprep.subr.mxu0 0.0
      %422 = vmatpush2.msra.mxu0 0.0
      %423 = vmatprep.mubr.f32.mxu0 0.0
      %424 = vmatmul.mubr.f32.gmra.mxu0 %v356
      %v425 = vpop.f32.mrf.mxu0
      %v426 = vadd.f32 0.0, %v425
      %v427 = vpop.f32.mrf.mxu0
      %428 = vdwg.mxu0
      %v429 = vadd.f32 %v358, %v426
      %v430 = vtanh.pop %v429
      %s431 = scalar_lea.vmem [#allocation4], 40
      %v432 = vld [vmem:[%s431] sm:$0xff]
      %433 = vmatprep.subr.mxu0 0.0
      %434 = vmatpush1.msra.mxu0 %v57
      %435 = vmatprep.subr.mxu0 0.0
      %436 = vmatpush1.msra.mxu0 %v56
      %437 = vmatprep.subr.mxu0 0.0
      %438 = vmatpush1.msra.mxu0 %v55
      %439 = vmatprep.subr.mxu0 0.0
      %440 = vmatpush1.msra.mxu0 %v54
      %441 = vmatprep.subr.mxu0 0.0
      %442 = vmatpush1.msra.mxu0 %v53
      %443 = vmatprep.subr.mxu0 0.0
      %444 = vmatpush1.msra.mxu0 %v52
      %445 = vmatprep.subr.mxu0 0.0
      %446 = vmatpush1.msra.mxu0 %v51
      %447 = vmatprep.subr.mxu0 0.0
      %448 = vmatpush1.msra.mxu0 %v50
      %449 = vmatprep.subr.mxu0 0.0
      %450 = vmatpush1.msra.mxu0 %v49
      %451 = vmatprep.subr.mxu0 0.0
      %452 = vmatpush1.msra.mxu0 %v48
      %453 = vmatprep.subr.mxu0 0.0
      %454 = vmatpush1.msra.mxu0 %v47
      %455 = vmatprep.subr.mxu0 0.0
      %456 = vmatpush1.msra.mxu0 %v46
      %457 = vmatprep.subr.mxu0 0.0
      %458 = vmatpush1.msra.mxu0 %v45
      %459 = vmatprep.subr.mxu0 0.0
      %460 = vmatpush1.msra.mxu0 %v44
      %461 = vmatprep.subr.mxu0 0.0
      %462 = vmatpush1.msra.mxu0 %v43
      %463 = vmatprep.subr.mxu0 0.0
      %464 = vmatpush1.msra.mxu0 %v42
      %465 = vmatprep.subr.mxu0 0.0
      %466 = vmatpush2.msra.mxu0 0.0
      %467 = vmatprep.subr.mxu0 0.0
      %468 = vmatpush2.msra.mxu0 0.0
      %469 = vmatprep.subr.mxu0 0.0
      %470 = vmatpush2.msra.mxu0 0.0
      %471 = vmatprep.subr.mxu0 0.0
      %472 = vmatpush2.msra.mxu0 0.0
      %473 = vmatprep.subr.mxu0 0.0
      %474 = vmatpush2.msra.mxu0 0.0
      %475 = vmatprep.subr.mxu0 0.0
      %476 = vmatpush2.msra.mxu0 0.0
      %477 = vmatprep.subr.mxu0 0.0
      %478 = vmatpush2.msra.mxu0 0.0
      %479 = vmatprep.subr.mxu0 0.0
      %480 = vmatpush2.msra.mxu0 0.0
      %481 = vmatprep.subr.mxu0 0.0
      %482 = vmatpush2.msra.mxu0 0.0
      %483 = vmatprep.subr.mxu0 0.0
      %484 = vmatpush2.msra.mxu0 0.0
      %485 = vmatprep.subr.mxu0 0.0
      %486 = vmatpush2.msra.mxu0 0.0
      %487 = vmatprep.subr.mxu0 0.0
      %488 = vmatpush2.msra.mxu0 0.0
      %489 = vmatprep.subr.mxu0 0.0
      %490 = vmatpush2.msra.mxu0 0.0
      %491 = vmatprep.subr.mxu0 0.0
      %492 = vmatpush2.msra.mxu0 0.0
      %493 = vmatprep.subr.mxu0 0.0
      %494 = vmatpush2.msra.mxu0 0.0
      %495 = vmatprep.subr.mxu0 0.0
      %496 = vmatpush2.msra.mxu0 0.0
      %497 = vmatprep.mubr.f32.mxu0 0.0
      %498 = vmatmul.mubr.f32.gmra.mxu0 %v430
      %v499 = vpop.f32.mrf.mxu0
      %v500 = vadd.f32 0.0, %v499
      %v501 = vpop.f32.mrf.mxu0
      %502 = vdwg.mxu0
      %v503 = vadd.f32 %v432, %v500
      %v504 = vtanh.pop %v503
      %s505 = scalar_lea.vmem [#allocation4], 48
      %v506 = vld [vmem:[%s505] sm:$0xff]
      %507 = vmatprep.subr.mxu0 0.0
      %508 = vmatpush1.msra.mxu0 %v57
      %509 = vmatprep.subr.mxu0 0.0
      %510 = vmatpush1.msra.mxu0 %v56
      %511 = vmatprep.subr.mxu0 0.0
      %512 = vmatpush1.msra.mxu0 %v55
      %513 = vmatprep.subr.mxu0 0.0
      %514 = vmatpush1.msra.mxu0 %v54
      %515 = vmatprep.subr.mxu0 0.0
      %516 = vmatpush1.msra.mxu0 %v53
      %517 = vmatprep.subr.mxu0 0.0
      %518 = vmatpush1.msra.mxu0 %v52
      %519 = vmatprep.subr.mxu0 0.0
      %520 = vmatpush1.msra.mxu0 %v51
      %521 = vmatprep.subr.mxu0 0.0
      %522 = vmatpush1.msra.mxu0 %v50
      %523 = vmatprep.subr.mxu0 0.0
      %524 = vmatpush1.msra.mxu0 %v49
      %525 = vmatprep.subr.mxu0 0.0
      %526 = vmatpush1.msra.mxu0 %v48
      %527 = vmatprep.subr.mxu0 0.0
      %528 = vmatpush1.msra.mxu0 %v47
      %529 = vmatprep.subr.mxu0 0.0
      %530 = vmatpush1.msra.mxu0 %v46
      %531 = vmatprep.subr.mxu0 0.0
      %532 = vmatpush1.msra.mxu0 %v45
      %533 = vmatprep.subr.mxu0 0.0
      %534 = vmatpush1.msra.mxu0 %v44
      %535 = vmatprep.subr.mxu0 0.0
      %536 = vmatpush1.msra.mxu0 %v43
      %537 = vmatprep.subr.mxu0 0.0
      %538 = vmatpush1.msra.mxu0 %v42
      %539 = vmatprep.subr.mxu0 0.0
      %540 = vmatpush2.msra.mxu0 0.0
      %541 = vmatprep.subr.mxu0 0.0
      %542 = vmatpush2.msra.mxu0 0.0
      %543 = vmatprep.subr.mxu0 0.0
      %544 = vmatpush2.msra.mxu0 0.0
      %545 = vmatprep.subr.mxu0 0.0
      %546 = vmatpush2.msra.mxu0 0.0
      %547 = vmatprep.subr.mxu0 0.0
      %548 = vmatpush2.msra.mxu0 0.0
      %549 = vmatprep.subr.mxu0 0.0
      %550 = vmatpush2.msra.mxu0 0.0
      %551 = vmatprep.subr.mxu0 0.0
      %552 = vmatpush2.msra.mxu0 0.0
      %553 = vmatprep.subr.mxu0 0.0
      %554 = vmatpush2.msra.mxu0 0.0
      %555 = vmatprep.subr.mxu0 0.0
      %556 = vmatpush2.msra.mxu0 0.0
      %557 = vmatprep.subr.mxu0 0.0
      %558 = vmatpush2.msra.mxu0 0.0
      %559 = vmatprep.subr.mxu0 0.0
      %560 = vmatpush2.msra.mxu0 0.0
      %561 = vmatprep.subr.mxu0 0.0
      %562 = vmatpush2.msra.mxu0 0.0
      %563 = vmatprep.subr.mxu0 0.0
      %564 = vmatpush2.msra.mxu0 0.0
      %565 = vmatprep.subr.mxu0 0.0
      %566 = vmatpush2.msra.mxu0 0.0
      %567 = vmatprep.subr.mxu0 0.0
      %568 = vmatpush2.msra.mxu0 0.0
      %569 = vmatprep.subr.mxu0 0.0
      %570 = vmatpush2.msra.mxu0 0.0
      %571 = vmatprep.mubr.f32.mxu0 0.0
      %572 = vmatmul.mubr.f32.gmra.mxu0 %v504
      %v573 = vpop.f32.mrf.mxu0
      %v574 = vadd.f32 0.0, %v573
      %v575 = vpop.f32.mrf.mxu0
      %576 = vdwg.mxu0
      %v577 = vadd.f32 %v506, %v574
      %v578 = vtanh.pop %v577
      %s579 = scalar_lea.vmem [#allocation4], 56
      %v580 = vld [vmem:[%s579] sm:$0xff]
      %581 = vmatprep.subr.mxu0 0.0
      %582 = vmatpush1.msra.mxu0 %v57
      %583 = vmatprep.subr.mxu0 0.0
      %584 = vmatpush1.msra.mxu0 %v56
      %585 = vmatprep.subr.mxu0 0.0
      %586 = vmatpush1.msra.mxu0 %v55
      %587 = vmatprep.subr.mxu0 0.0
      %588 = vmatpush1.msra.mxu0 %v54
      %589 = vmatprep.subr.mxu0 0.0
      %590 = vmatpush1.msra.mxu0 %v53
      %591 = vmatprep.subr.mxu0 0.0
      %592 = vmatpush1.msra.mxu0 %v52
      %593 = vmatprep.subr.mxu0 0.0
      %594 = vmatpush1.msra.mxu0 %v51
      %595 = vmatprep.subr.mxu0 0.0
      %596 = vmatpush1.msra.mxu0 %v50
      %597 = vmatprep.subr.mxu0 0.0
      %598 = vmatpush1.msra.mxu0 %v49
      %599 = vmatprep.subr.mxu0 0.0
      %600 = vmatpush1.msra.mxu0 %v48
      %601 = vmatprep.subr.mxu0 0.0
      %602 = vmatpush1.msra.mxu0 %v47
      %603 = vmatprep.subr.mxu0 0.0
      %604 = vmatpush1.msra.mxu0 %v46
      %605 = vmatprep.subr.mxu0 0.0
      %606 = vmatpush1.msra.mxu0 %v45
      %607 = vmatprep.subr.mxu0 0.0
      %608 = vmatpush1.msra.mxu0 %v44
      %609 = vmatprep.subr.mxu0 0.0
      %610 = vmatpush1.msra.mxu0 %v43
      %611 = vmatprep.subr.mxu0 0.0
      %612 = vmatpush1.msra.mxu0 %v42
      %613 = vmatprep.subr.mxu0 0.0
      %614 = vmatpush2.msra.mxu0 0.0
      %615 = vmatprep.subr.mxu0 0.0
      %616 = vmatpush2.msra.mxu0 0.0
      %617 = vmatprep.subr.mxu0 0.0
      %618 = vmatpush2.msra.mxu0 0.0
      %619 = vmatprep.subr.mxu0 0.0
      %620 = vmatpush2.msra.mxu0 0.0
      %621 = vmatprep.subr.mxu0 0.0
      %622 = vmatpush2.msra.mxu0 0.0
      %623 = vmatprep.subr.mxu0 0.0
      %624 = vmatpush2.msra.mxu0 0.0
      %625 = vmatprep.subr.mxu0 0.0
      %626 = vmatpush2.msra.mxu0 0.0
      %627 = vmatprep.subr.mxu0 0.0
      %628 = vmatpush2.msra.mxu0 0.0
      %629 = vmatprep.subr.mxu0 0.0
      %630 = vmatpush2.msra.mxu0 0.0
      %631 = vmatprep.subr.mxu0 0.0
      %632 = vmatpush2.msra.mxu0 0.0
      %633 = vmatprep.subr.mxu0 0.0
      %634 = vmatpush2.msra.mxu0 0.0
      %635 = vmatprep.subr.mxu0 0.0
      %636 = vmatpush2.msra.mxu0 0.0
      %637 = vmatprep.subr.mxu0 0.0
      %638 = vmatpush2.msra.mxu0 0.0
      %639 = vmatprep.subr.mxu0 0.0
      %640 = vmatpush2.msra.mxu0 0.0
      %641 = vmatprep.subr.mxu0 0.0
      %642 = vmatpush2.msra.mxu0 0.0
      %643 = vmatprep.subr.mxu0 0.0
      %644 = vmatpush2.msra.mxu0 0.0
      %645 = vmatprep.mubr.f32.mxu0 0.0
      %646 = vmatmul.mubr.f32.gmra.mxu0 %v578
      %v647 = vpop.f32.mrf.mxu0
      %v648 = vadd.f32 0.0, %v647
      %v649 = vpop.f32.mrf.mxu0
      %650 = vdwg.mxu0
      %v651 = vadd.f32 %v580, %v648
      %v652 = vtanh.pop %v651
      %653 = vst [vmem:[#allocation9] sm:$0xff] %v652
    $region21: #{tpu_custom_call.1} parent=1 // pred_fallthru
      _
    %p654 = scmp.gt.s32.totalorder 0, 0
    // Predicated region
    $region22: #{tpu_custom_call.1} parent=1 // pred_check
      %p655 = pneg %p654
    $region23: #{tpu_custom_call.1} parent=1 // pred_check_branch
      %657 = sbr.rel (%p655) target = $region25
    $region24: #{tpu_custom_call.1} parent=1 // pred_region
      %v658 = vld [vmem:[#allocation9] sm:$0xff]
      %v659 = vld [vmem:[#allocation4] sm:$0xff]
      %660 = vmatprep.subr.mxu0 0.0
      %661 = vmatpush1.msra.mxu0 %v57
      %662 = vmatprep.subr.mxu0 0.0
      %663 = vmatpush1.msra.mxu0 %v56
      %664 = vmatprep.subr.mxu0 0.0
      %665 = vmatpush1.msra.mxu0 %v55
      %666 = vmatprep.subr.mxu0 0.0
      %667 = vmatpush1.msra.mxu0 %v54
      %668 = vmatprep.subr.mxu0 0.0
      %669 = vmatpush1.msra.mxu0 %v53
      %670 = vmatprep.subr.mxu0 0.0
      %671 = vmatpush1.msra.mxu0 %v52
      %672 = vmatprep.subr.mxu0 0.0
      %673 = vmatpush1.msra.mxu0 %v51
      %674 = vmatprep.subr.mxu0 0.0
      %675 = vmatpush1.msra.mxu0 %v50
      %676 = vmatprep.subr.mxu0 0.0
      %677 = vmatpush1.msra.mxu0 %v49
      %678 = vmatprep.subr.mxu0 0.0
      %679 = vmatpush1.msra.mxu0 %v48
      %680 = vmatprep.subr.mxu0 0.0
      %681 = vmatpush1.msra.mxu0 %v47
      %682 = vmatprep.subr.mxu0 0.0
      %683 = vmatpush1.msra.mxu0 %v46
      %684 = vmatprep.subr.mxu0 0.0
      %685 = vmatpush1.msra.mxu0 %v45
      %686 = vmatprep.subr.mxu0 0.0
      %687 = vmatpush1.msra.mxu0 %v44
      %688 = vmatprep.subr.mxu0 0.0
      %689 = vmatpush1.msra.mxu0 %v43
      %690 = vmatprep.subr.mxu0 0.0
      %691 = vmatpush1.msra.mxu0 %v42
      %692 = vmatprep.subr.mxu0 0.0
      %693 = vmatpush2.msra.mxu0 0.0
      %694 = vmatprep.subr.mxu0 0.0
      %695 = vmatpush2.msra.mxu0 0.0
      %696 = vmatprep.subr.mxu0 0.0
      %697 = vmatpush2.msra.mxu0 0.0
      %698 = vmatprep.subr.mxu0 0.0
      %699 = vmatpush2.msra.mxu0 0.0
      %700 = vmatprep.subr.mxu0 0.0
      %701 = vmatpush2.msra.mxu0 0.0
      %702 = vmatprep.subr.mxu0 0.0
      %703 = vmatpush2.msra.mxu0 0.0
      %704 = vmatprep.subr.mxu0 0.0
      %705 = vmatpush2.msra.mxu0 0.0
      %706 = vmatprep.subr.mxu0 0.0
      %707 = vmatpush2.msra.mxu0 0.0
      %708 = vmatprep.subr.mxu0 0.0
      %709 = vmatpush2.msra.mxu0 0.0
      %710 = vmatprep.subr.mxu0 0.0
      %711 = vmatpush2.msra.mxu0 0.0
      %712 = vmatprep.subr.mxu0 0.0
      %713 = vmatpush2.msra.mxu0 0.0
      %714 = vmatprep.subr.mxu0 0.0
      %715 = vmatpush2.msra.mxu0 0.0
      %716 = vmatprep.subr.mxu0 0.0
      %717 = vmatpush2.msra.mxu0 0.0
      %718 = vmatprep.subr.mxu0 0.0
      %719 = vmatpush2.msra.mxu0 0.0
      %720 = vmatprep.subr.mxu0 0.0
      %721 = vmatpush2.msra.mxu0 0.0
      %722 = vmatprep.subr.mxu0 0.0
      %723 = vmatpush2.msra.mxu0 0.0
      %724 = vmatprep.mubr.f32.mxu0 0.0
      %725 = vmatmul.mubr.f32.gmra.mxu0 %v658
      %v726 = vpop.f32.mrf.mxu0
      %v727 = vadd.f32 0.0, %v726
      %v728 = vpop.f32.mrf.mxu0
      %729 = vdwg.mxu0
      %v730 = vadd.f32 %v659, %v727
      %v731 = vtanh.pop %v730
      %s732 = scalar_lea.vmem [#allocation4], 8
      %v733 = vld [vmem:[%s732] sm:$0xff]
      %734 = vmatprep.subr.mxu0 0.0
      %735 = vmatpush1.msra.mxu0 %v57
      %736 = vmatprep.subr.mxu0 0.0
      %737 = vmatpush1.msra.mxu0 %v56
      %738 = vmatprep.subr.mxu0 0.0
      %739 = vmatpush1.msra.mxu0 %v55
      %740 = vmatprep.subr.mxu0 0.0
      %741 = vmatpush1.msra.mxu0 %v54
      %742 = vmatprep.subr.mxu0 0.0
      %743 = vmatpush1.msra.mxu0 %v53
      %744 = vmatprep.subr.mxu0 0.0
      %745 = vmatpush1.msra.mxu0 %v52
      %746 = vmatprep.subr.mxu0 0.0
      %747 = vmatpush1.msra.mxu0 %v51
      %748 = vmatprep.subr.mxu0 0.0
      %749 = vmatpush1.msra.mxu0 %v50
      %750 = vmatprep.subr.mxu0 0.0
      %751 = vmatpush1.msra.mxu0 %v49
      %752 = vmatprep.subr.mxu0 0.0
      %753 = vmatpush1.msra.mxu0 %v48
      %754 = vmatprep.subr.mxu0 0.0
      %755 = vmatpush1.msra.mxu0 %v47
      %756 = vmatprep.subr.mxu0 0.0
      %757 = vmatpush1.msra.mxu0 %v46
      %758 = vmatprep.subr.mxu0 0.0
      %759 = vmatpush1.msra.mxu0 %v45
      %760 = vmatprep.subr.mxu0 0.0
      %761 = vmatpush1.msra.mxu0 %v44
      %762 = vmatprep.subr.mxu0 0.0
      %763 = vmatpush1.msra.mxu0 %v43
      %764 = vmatprep.subr.mxu0 0.0
      %765 = vmatpush1.msra.mxu0 %v42
      %766 = vmatprep.subr.mxu0 0.0
      %767 = vmatpush2.msra.mxu0 0.0
      %768 = vmatprep.subr.mxu0 0.0
      %769 = vmatpush2.msra.mxu0 0.0
      %770 = vmatprep.subr.mxu0 0.0
      %771 = vmatpush2.msra.mxu0 0.0
      %772 = vmatprep.subr.mxu0 0.0
      %773 = vmatpush2.msra.mxu0 0.0
      %774 = vmatprep.subr.mxu0 0.0
      %775 = vmatpush2.msra.mxu0 0.0
      %776 = vmatprep.subr.mxu0 0.0
      %777 = vmatpush2.msra.mxu0 0.0
      %778 = vmatprep.subr.mxu0 0.0
      %779 = vmatpush2.msra.mxu0 0.0
      %780 = vmatprep.subr.mxu0 0.0
      %781 = vmatpush2.msra.mxu0 0.0
      %782 = vmatprep.subr.mxu0 0.0
      %783 = vmatpush2.msra.mxu0 0.0
      %784 = vmatprep.subr.mxu0 0.0
      %785 = vmatpush2.msra.mxu0 0.0
      %786 = vmatprep.subr.mxu0 0.0
      %787 = vmatpush2.msra.mxu0 0.0
      %788 = vmatprep.subr.mxu0 0.0
      %789 = vmatpush2.msra.mxu0 0.0
      %790 = vmatprep.subr.mxu0 0.0
      %791 = vmatpush2.msra.mxu0 0.0
      %792 = vmatprep.subr.mxu0 0.0
      %793 = vmatpush2.msra.mxu0 0.0
      %794 = vmatprep.subr.mxu0 0.0
      %795 = vmatpush2.msra.mxu0 0.0
      %796 = vmatprep.subr.mxu0 0.0
      %797 = vmatpush2.msra.mxu0 0.0
      %798 = vmatprep.mubr.f32.mxu0 0.0
      %799 = vmatmul.mubr.f32.gmra.mxu0 %v731
      %v800 = vpop.f32.mrf.mxu0
      %v801 = vadd.f32 0.0, %v800
      %v802 = vpop.f32.mrf.mxu0
      %803 = vdwg.mxu0
      %v804 = vadd.f32 %v733, %v801
      %v805 = vtanh.pop %v804
      %s806 = scalar_lea.vmem [#allocation4], 16
      %v807 = vld [vmem:[%s806] sm:$0xff]
      %808 = vmatprep.subr.mxu0 0.0
      %809 = vmatpush1.msra.mxu0 %v57
      %810 = vmatprep.subr.mxu0 0.0
      %811 = vmatpush1.msra.mxu0 %v56
      %812 = vmatprep.subr.mxu0 0.0
      %813 = vmatpush1.msra.mxu0 %v55
      %814 = vmatprep.subr.mxu0 0.0
      %815 = vmatpush1.msra.mxu0 %v54
      %816 = vmatprep.subr.mxu0 0.0
      %817 = vmatpush1.msra.mxu0 %v53
      %818 = vmatprep.subr.mxu0 0.0
      %819 = vmatpush1.msra.mxu0 %v52
      %820 = vmatprep.subr.mxu0 0.0
      %821 = vmatpush1.msra.mxu0 %v51
      %822 = vmatprep.subr.mxu0 0.0
      %823 = vmatpush1.msra.mxu0 %v50
      %824 = vmatprep.subr.mxu0 0.0
      %825 = vmatpush1.msra.mxu0 %v49
      %826 = vmatprep.subr.mxu0 0.0
      %827 = vmatpush1.msra.mxu0 %v48
      %828 = vmatprep.subr.mxu0 0.0
      %829 = vmatpush1.msra.mxu0 %v47
      %830 = vmatprep.subr.mxu0 0.0
      %831 = vmatpush1.msra.mxu0 %v46
      %832 = vmatprep.subr.mxu0 0.0
      %833 = vmatpush1.msra.mxu0 %v45
      %834 = vmatprep.subr.mxu0 0.0
      %835 = vmatpush1.msra.mxu0 %v44
      %836 = vmatprep.subr.mxu0 0.0
      %837 = vmatpush1.msra.mxu0 %v43
      %838 = vmatprep.subr.mxu0 0.0
      %839 = vmatpush1.msra.mxu0 %v42
      %840 = vmatprep.subr.mxu0 0.0
      %841 = vmatpush2.msra.mxu0 0.0
      %842 = vmatprep.subr.mxu0 0.0
      %843 = vmatpush2.msra.mxu0 0.0
      %844 = vmatprep.subr.mxu0 0.0
      %845 = vmatpush2.msra.mxu0 0.0
      %846 = vmatprep.subr.mxu0 0.0
      %847 = vmatpush2.msra.mxu0 0.0
      %848 = vmatprep.subr.mxu0 0.0
      %849 = vmatpush2.msra.mxu0 0.0
      %850 = vmatprep.subr.mxu0 0.0
      %851 = vmatpush2.msra.mxu0 0.0
      %852 = vmatprep.subr.mxu0 0.0
      %853 = vmatpush2.msra.mxu0 0.0
      %854 = vmatprep.subr.mxu0 0.0
      %855 = vmatpush2.msra.mxu0 0.0
      %856 = vmatprep.subr.mxu0 0.0
      %857 = vmatpush2.msra.mxu0 0.0
      %858 = vmatprep.subr.mxu0 0.0
      %859 = vmatpush2.msra.mxu0 0.0
      %860 = vmatprep.subr.mxu0 0.0
      %861 = vmatpush2.msra.mxu0 0.0
      %862 = vmatprep.subr.mxu0 0.0
      %863 = vmatpush2.msra.mxu0 0.0
      %864 = vmatprep.subr.mxu0 0.0
      %865 = vmatpush2.msra.mxu0 0.0
      %866 = vmatprep.subr.mxu0 0.0
      %867 = vmatpush2.msra.mxu0 0.0
      %868 = vmatprep.subr.mxu0 0.0
      %869 = vmatpush2.msra.mxu0 0.0
      %870 = vmatprep.subr.mxu0 0.0
      %871 = vmatpush2.msra.mxu0 0.0
      %872 = vmatprep.mubr.f32.mxu0 0.0
      %873 = vmatmul.mubr.f32.gmra.mxu0 %v805
      %v874 = vpop.f32.mrf.mxu0
      %v875 = vadd.f32 0.0, %v874
      %v876 = vpop.f32.mrf.mxu0
      %877 = vdwg.mxu0
      %v878 = vadd.f32 %v807, %v875
      %v879 = vtanh.pop %v878
      %s880 = scalar_lea.vmem [#allocation4], 24
      %v881 = vld [vmem:[%s880] sm:$0xff]
      %882 = vmatprep.subr.mxu0 0.0
      %883 = vmatpush1.msra.mxu0 %v57
      %884 = vmatprep.subr.mxu0 0.0
      %885 = vmatpush1.msra.mxu0 %v56
      %886 = vmatprep.subr.mxu0 0.0
      %887 = vmatpush1.msra.mxu0 %v55
      %888 = vmatprep.subr.mxu0 0.0
      %889 = vmatpush1.msra.mxu0 %v54
      %890 = vmatprep.subr.mxu0 0.0
      %891 = vmatpush1.msra.mxu0 %v53
      %892 = vmatprep.subr.mxu0 0.0
      %893 = vmatpush1.msra.mxu0 %v52
      %894 = vmatprep.subr.mxu0 0.0
      %895 = vmatpush1.msra.mxu0 %v51
      %896 = vmatprep.subr.mxu0 0.0
      %897 = vmatpush1.msra.mxu0 %v50
      %898 = vmatprep.subr.mxu0 0.0
      %899 = vmatpush1.msra.mxu0 %v49
      %900 = vmatprep.subr.mxu0 0.0
      %901 = vmatpush1.msra.mxu0 %v48
      %902 = vmatprep.subr.mxu0 0.0
      %903 = vmatpush1.msra.mxu0 %v47
      %904 = vmatprep.subr.mxu0 0.0
      %905 = vmatpush1.msra.mxu0 %v46
      %906 = vmatprep.subr.mxu0 0.0
      %907 = vmatpush1.msra.mxu0 %v45
      %908 = vmatprep.subr.mxu0 0.0
      %909 = vmatpush1.msra.mxu0 %v44
      %910 = vmatprep.subr.mxu0 0.0
      %911 = vmatpush1.msra.mxu0 %v43
      %912 = vmatprep.subr.mxu0 0.0
      %913 = vmatpush1.msra.mxu0 %v42
      %914 = vmatprep.subr.mxu0 0.0
      %915 = vmatpush2.msra.mxu0 0.0
      %916 = vmatprep.subr.mxu0 0.0
      %917 = vmatpush2.msra.mxu0 0.0
      %918 = vmatprep.subr.mxu0 0.0
      %919 = vmatpush2.msra.mxu0 0.0
      %920 = vmatprep.subr.mxu0 0.0
      %921 = vmatpush2.msra.mxu0 0.0
      %922 = vmatprep.subr.mxu0 0.0
      %923 = vmatpush2.msra.mxu0 0.0
      %924 = vmatprep.subr.mxu0 0.0
      %925 = vmatpush2.msra.mxu0 0.0
      %926 = vmatprep.subr.mxu0 0.0
      %927 = vmatpush2.msra.mxu0 0.0
      %928 = vmatprep.subr.mxu0 0.0
      %929 = vmatpush2.msra.mxu0 0.0
      %930 = vmatprep.subr.mxu0 0.0
      %931 = vmatpush2.msra.mxu0 0.0
      %932 = vmatprep.subr.mxu0 0.0
      %933 = vmatpush2.msra.mxu0 0.0
      %934 = vmatprep.subr.mxu0 0.0
      %935 = vmatpush2.msra.mxu0 0.0
      %936 = vmatprep.subr.mxu0 0.0
      %937 = vmatpush2.msra.mxu0 0.0
      %938 = vmatprep.subr.mxu0 0.0
      %939 = vmatpush2.msra.mxu0 0.0
      %940 = vmatprep.subr.mxu0 0.0
      %941 = vmatpush2.msra.mxu0 0.0
      %942 = vmatprep.subr.mxu0 0.0
      %943 = vmatpush2.msra.mxu0 0.0
      %944 = vmatprep.subr.mxu0 0.0
      %945 = vmatpush2.msra.mxu0 0.0
      %946 = vmatprep.mubr.f32.mxu0 0.0
      %947 = vmatmul.mubr.f32.gmra.mxu0 %v879
      %v948 = vpop.f32.mrf.mxu0
      %v949 = vadd.f32 0.0, %v948
      %v950 = vpop.f32.mrf.mxu0
      %951 = vdwg.mxu0
      %v952 = vadd.f32 %v881, %v949
      %v953 = vtanh.pop %v952
      %s954 = scalar_lea.vmem [#allocation4], 32
      %v955 = vld [vmem:[%s954] sm:$0xff]
      %956 = vmatprep.subr.mxu0 0.0
      %957 = vmatpush1.msra.mxu0 %v57
      %958 = vmatprep.subr.mxu0 0.0
      %959 = vmatpush1.msra.mxu0 %v56
      %960 = vmatprep.subr.mxu0 0.0
      %961 = vmatpush1.msra.mxu0 %v55
      %962 = vmatprep.subr.mxu0 0.0
      %963 = vmatpush1.msra.mxu0 %v54
      %964 = vmatprep.subr.mxu0 0.0
      %965 = vmatpush1.msra.mxu0 %v53
      %966 = vmatprep.subr.mxu0 0.0
      %967 = vmatpush1.msra.mxu0 %v52
      %968 = vmatprep.subr.mxu0 0.0
      %969 = vmatpush1.msra.mxu0 %v51
      %970 = vmatprep.subr.mxu0 0.0
      %971 = vmatpush1.msra.mxu0 %v50
      %972 = vmatprep.subr.mxu0 0.0
      %973 = vmatpush1.msra.mxu0 %v49
      %974 = vmatprep.subr.mxu0 0.0
      %975 = vmatpush1.msra.mxu0 %v48
      %976 = vmatprep.subr.mxu0 0.0
      %977 = vmatpush1.msra.mxu0 %v47
      %978 = vmatprep.subr.mxu0 0.0
      %979 = vmatpush1.msra.mxu0 %v46
      %980 = vmatprep.subr.mxu0 0.0
      %981 = vmatpush1.msra.mxu0 %v45
      %982 = vmatprep.subr.mxu0 0.0
      %983 = vmatpush1.msra.mxu0 %v44
      %984 = vmatprep.subr.mxu0 0.0
      %985 = vmatpush1.msra.mxu0 %v43
      %986 = vmatprep.subr.mxu0 0.0
      %987 = vmatpush1.msra.mxu0 %v42
      %988 = vmatprep.subr.mxu0 0.0
      %989 = vmatpush2.msra.mxu0 0.0
      %990 = vmatprep.subr.mxu0 0.0
      %991 = vmatpush2.msra.mxu0 0.0
      %992 = vmatprep.subr.mxu0 0.0
      %993 = vmatpush2.msra.mxu0 0.0
      %994 = vmatprep.subr.mxu0 0.0
      %995 = vmatpush2.msra.mxu0 0.0
      %996 = vmatprep.subr.mxu0 0.0
      %997 = vmatpush2.msra.mxu0 0.0
      %998 = vmatprep.subr.mxu0 0.0
      %999 = vmatpush2.msra.mxu0 0.0
      %1000 = vmatprep.subr.mxu0 0.0
      %1001 = vmatpush2.msra.mxu0 0.0
      %1002 = vmatprep.subr.mxu0 0.0
      %1003 = vmatpush2.msra.mxu0 0.0
      %1004 = vmatprep.subr.mxu0 0.0
      %1005 = vmatpush2.msra.mxu0 0.0
      %1006 = vmatprep.subr.mxu0 0.0
      %1007 = vmatpush2.msra.mxu0 0.0
      %1008 = vmatprep.subr.mxu0 0.0
      %1009 = vmatpush2.msra.mxu0 0.0
      %1010 = vmatprep.subr.mxu0 0.0
      %1011 = vmatpush2.msra.mxu0 0.0
      %1012 = vmatprep.subr.mxu0 0.0
      %1013 = vmatpush2.msra.mxu0 0.0
      %1014 = vmatprep.subr.mxu0 0.0
      %1015 = vmatpush2.msra.mxu0 0.0
      %1016 = vmatprep.subr.mxu0 0.0
      %1017 = vmatpush2.msra.mxu0 0.0
      %1018 = vmatprep.subr.mxu0 0.0
      %1019 = vmatpush2.msra.mxu0 0.0
      %1020 = vmatprep.mubr.f32.mxu0 0.0
      %1021 = vmatmul.mubr.f32.gmra.mxu0 %v953
      %v1022 = vpop.f32.mrf.mxu0
      %v1023 = vadd.f32 0.0, %v1022
      %v1024 = vpop.f32.mrf.mxu0
      %1025 = vdwg.mxu0
      %v1026 = vadd.f32 %v955, %v1023
      %v1027 = vtanh.pop %v1026
      %s1028 = scalar_lea.vmem [#allocation4], 40
      %v1029 = vld [vmem:[%s1028] sm:$0xff]
      %1030 = vmatprep.subr.mxu0 0.0
      %1031 = vmatpush1.msra.mxu0 %v57
      %1032 = vmatprep.subr.mxu0 0.0
      %1033 = vmatpush1.msra.mxu0 %v56
      %1034 = vmatprep.subr.mxu0 0.0
      %1035 = vmatpush1.msra.mxu0 %v55
      %1036 = vmatprep.subr.mxu0 0.0
      %1037 = vmatpush1.msra.mxu0 %v54
      %1038 = vmatprep.subr.mxu0 0.0
      %1039 = vmatpush1.msra.mxu0 %v53
      %1040 = vmatprep.subr.mxu0 0.0
      %1041 = vmatpush1.msra.mxu0 %v52
      %1042 = vmatprep.subr.mxu0 0.0
      %1043 = vmatpush1.msra.mxu0 %v51
      %1044 = vmatprep.subr.mxu0 0.0
      %1045 = vmatpush1.msra.mxu0 %v50
      %1046 = vmatprep.subr.mxu0 0.0
      %1047 = vmatpush1.msra.mxu0 %v49
      %1048 = vmatprep.subr.mxu0 0.0
      %1049 = vmatpush1.msra.mxu0 %v48
      %1050 = vmatprep.subr.mxu0 0.0
      %1051 = vmatpush1.msra.mxu0 %v47
      %1052 = vmatprep.subr.mxu0 0.0
      %1053 = vmatpush1.msra.mxu0 %v46
      %1054 = vmatprep.subr.mxu0 0.0
      %1055 = vmatpush1.msra.mxu0 %v45
      %1056 = vmatprep.subr.mxu0 0.0
      %1057 = vmatpush1.msra.mxu0 %v44
      %1058 = vmatprep.subr.mxu0 0.0
      %1059 = vmatpush1.msra.mxu0 %v43
      %1060 = vmatprep.subr.mxu0 0.0
      %1061 = vmatpush1.msra.mxu0 %v42
      %1062 = vmatprep.subr.mxu0 0.0
      %1063 = vmatpush2.msra.mxu0 0.0
      %1064 = vmatprep.subr.mxu0 0.0
      %1065 = vmatpush2.msra.mxu0 0.0
      %1066 = vmatprep.subr.mxu0 0.0
      %1067 = vmatpush2.msra.mxu0 0.0
      %1068 = vmatprep.subr.mxu0 0.0
      %1069 = vmatpush2.msra.mxu0 0.0
      %1070 = vmatprep.subr.mxu0 0.0
      %1071 = vmatpush2.msra.mxu0 0.0
      %1072 = vmatprep.subr.mxu0 0.0
      %1073 = vmatpush2.msra.mxu0 0.0
      %1074 = vmatprep.subr.mxu0 0.0
      %1075 = vmatpush2.msra.mxu0 0.0
      %1076 = vmatprep.subr.mxu0 0.0
      %1077 = vmatpush2.msra.mxu0 0.0
      %1078 = vmatprep.subr.mxu0 0.0
      %1079 = vmatpush2.msra.mxu0 0.0
      %1080 = vmatprep.subr.mxu0 0.0
      %1081 = vmatpush2.msra.mxu0 0.0
      %1082 = vmatprep.subr.mxu0 0.0
      %1083 = vmatpush2.msra.mxu0 0.0
      %1084 = vmatprep.subr.mxu0 0.0
      %1085 = vmatpush2.msra.mxu0 0.0
      %1086 = vmatprep.subr.mxu0 0.0
      %1087 = vmatpush2.msra.mxu0 0.0
      %1088 = vmatprep.subr.mxu0 0.0
      %1089 = vmatpush2.msra.mxu0 0.0
      %1090 = vmatprep.subr.mxu0 0.0
      %1091 = vmatpush2.msra.mxu0 0.0
      %1092 = vmatprep.subr.mxu0 0.0
      %1093 = vmatpush2.msra.mxu0 0.0
      %1094 = vmatprep.mubr.f32.mxu0 0.0
      %1095 = vmatmul.mubr.f32.gmra.mxu0 %v1027
      %v1096 = vpop.f32.mrf.mxu0
      %v1097 = vadd.f32 0.0, %v1096
      %v1098 = vpop.f32.mrf.mxu0
      %1099 = vdwg.mxu0
      %v1100 = vadd.f32 %v1029, %v1097
      %v1101 = vtanh.pop %v1100
      %s1102 = scalar_lea.vmem [#allocation4], 48
      %v1103 = vld [vmem:[%s1102] sm:$0xff]
      %1104 = vmatprep.subr.mxu0 0.0
      %1105 = vmatpush1.msra.mxu0 %v57
      %1106 = vmatprep.subr.mxu0 0.0
      %1107 = vmatpush1.msra.mxu0 %v56
      %1108 = vmatprep.subr.mxu0 0.0
      %1109 = vmatpush1.msra.mxu0 %v55
      %1110 = vmatprep.subr.mxu0 0.0
      %1111 = vmatpush1.msra.mxu0 %v54
      %1112 = vmatprep.subr.mxu0 0.0
      %1113 = vmatpush1.msra.mxu0 %v53
      %1114 = vmatprep.subr.mxu0 0.0
      %1115 = vmatpush1.msra.mxu0 %v52
      %1116 = vmatprep.subr.mxu0 0.0
      %1117 = vmatpush1.msra.mxu0 %v51
      %1118 = vmatprep.subr.mxu0 0.0
      %1119 = vmatpush1.msra.mxu0 %v50
      %1120 = vmatprep.subr.mxu0 0.0
      %1121 = vmatpush1.msra.mxu0 %v49
      %1122 = vmatprep.subr.mxu0 0.0
      %1123 = vmatpush1.msra.mxu0 %v48
      %1124 = vmatprep.subr.mxu0 0.0
      %1125 = vmatpush1.msra.mxu0 %v47
      %1126 = vmatprep.subr.mxu0 0.0
      %1127 = vmatpush1.msra.mxu0 %v46
      %1128 = vmatprep.subr.mxu0 0.0
      %1129 = vmatpush1.msra.mxu0 %v45
      %1130 = vmatprep.subr.mxu0 0.0
      %1131 = vmatpush1.msra.mxu0 %v44
      %1132 = vmatprep.subr.mxu0 0.0
      %1133 = vmatpush1.msra.mxu0 %v43
      %1134 = vmatprep.subr.mxu0 0.0
      %1135 = vmatpush1.msra.mxu0 %v42
      %1136 = vmatprep.subr.mxu0 0.0
      %1137 = vmatpush2.msra.mxu0 0.0
      %1138 = vmatprep.subr.mxu0 0.0
      %1139 = vmatpush2.msra.mxu0 0.0
      %1140 = vmatprep.subr.mxu0 0.0
      %1141 = vmatpush2.msra.mxu0 0.0
      %1142 = vmatprep.subr.mxu0 0.0
      %1143 = vmatpush2.msra.mxu0 0.0
      %1144 = vmatprep.subr.mxu0 0.0
      %1145 = vmatpush2.msra.mxu0 0.0
      %1146 = vmatprep.subr.mxu0 0.0
      %1147 = vmatpush2.msra.mxu0 0.0
      %1148 = vmatprep.subr.mxu0 0.0
      %1149 = vmatpush2.msra.mxu0 0.0
      %1150 = vmatprep.subr.mxu0 0.0
      %1151 = vmatpush2.msra.mxu0 0.0
      %1152 = vmatprep.subr.mxu0 0.0
      %1153 = vmatpush2.msra.mxu0 0.0
      %1154 = vmatprep.subr.mxu0 0.0
      %1155 = vmatpush2.msra.mxu0 0.0
      %1156 = vmatprep.subr.mxu0 0.0
      %1157 = vmatpush2.msra.mxu0 0.0
      %1158 = vmatprep.subr.mxu0 0.0
      %1159 = vmatpush2.msra.mxu0 0.0
      %1160 = vmatprep.subr.mxu0 0.0
      %1161 = vmatpush2.msra.mxu0 0.0
      %1162 = vmatprep.subr.mxu0 0.0
      %1163 = vmatpush2.msra.mxu0 0.0
      %1164 = vmatprep.subr.mxu0 0.0
      %1165 = vmatpush2.msra.mxu0 0.0
      %1166 = vmatprep.subr.mxu0 0.0
      %1167 = vmatpush2.msra.mxu0 0.0
      %1168 = vmatprep.mubr.f32.mxu0 0.0
      %1169 = vmatmul.mubr.f32.gmra.mxu0 %v1101
      %v1170 = vpop.f32.mrf.mxu0
      %v1171 = vadd.f32 0.0, %v1170
      %v1172 = vpop.f32.mrf.mxu0
      %1173 = vdwg.mxu0
      %v1174 = vadd.f32 %v1103, %v1171
      %v1175 = vtanh.pop %v1174
      %s1176 = scalar_lea.vmem [#allocation4], 56
      %v1177 = vld [vmem:[%s1176] sm:$0xff]
      %1178 = vmatprep.subr.mxu0 0.0
      %1179 = vmatpush1.msra.mxu0 %v57
      %1180 = vmatprep.subr.mxu0 0.0
      %1181 = vmatpush1.msra.mxu0 %v56
      %1182 = vmatprep.subr.mxu0 0.0
      %1183 = vmatpush1.msra.mxu0 %v55
      %1184 = vmatprep.subr.mxu0 0.0
      %1185 = vmatpush1.msra.mxu0 %v54
      %1186 = vmatprep.subr.mxu0 0.0
      %1187 = vmatpush1.msra.mxu0 %v53
      %1188 = vmatprep.subr.mxu0 0.0
      %1189 = vmatpush1.msra.mxu0 %v52
      %1190 = vmatprep.subr.mxu0 0.0
      %1191 = vmatpush1.msra.mxu0 %v51
      %1192 = vmatprep.subr.mxu0 0.0
      %1193 = vmatpush1.msra.mxu0 %v50
      %1194 = vmatprep.subr.mxu0 0.0
      %1195 = vmatpush1.msra.mxu0 %v49
      %1196 = vmatprep.subr.mxu0 0.0
      %1197 = vmatpush1.msra.mxu0 %v48
      %1198 = vmatprep.subr.mxu0 0.0
      %1199 = vmatpush1.msra.mxu0 %v47
      %1200 = vmatprep.subr.mxu0 0.0
      %1201 = vmatpush1.msra.mxu0 %v46
      %1202 = vmatprep.subr.mxu0 0.0
      %1203 = vmatpush1.msra.mxu0 %v45
      %1204 = vmatprep.subr.mxu0 0.0
      %1205 = vmatpush1.msra.mxu0 %v44
      %1206 = vmatprep.subr.mxu0 0.0
      %1207 = vmatpush1.msra.mxu0 %v43
      %1208 = vmatprep.subr.mxu0 0.0
      %1209 = vmatpush1.msra.mxu0 %v42
      %1210 = vmatprep.subr.mxu0 0.0
      %1211 = vmatpush2.msra.mxu0 0.0
      %1212 = vmatprep.subr.mxu0 0.0
      %1213 = vmatpush2.msra.mxu0 0.0
      %1214 = vmatprep.subr.mxu0 0.0
      %1215 = vmatpush2.msra.mxu0 0.0
      %1216 = vmatprep.subr.mxu0 0.0
      %1217 = vmatpush2.msra.mxu0 0.0
      %1218 = vmatprep.subr.mxu0 0.0
      %1219 = vmatpush2.msra.mxu0 0.0
      %1220 = vmatprep.subr.mxu0 0.0
      %1221 = vmatpush2.msra.mxu0 0.0
      %1222 = vmatprep.subr.mxu0 0.0
      %1223 = vmatpush2.msra.mxu0 0.0
      %1224 = vmatprep.subr.mxu0 0.0
      %1225 = vmatpush2.msra.mxu0 0.0
      %1226 = vmatprep.subr.mxu0 0.0
      %1227 = vmatpush2.msra.mxu0 0.0
      %1228 = vmatprep.subr.mxu0 0.0
      %1229 = vmatpush2.msra.mxu0 0.0
      %1230 = vmatprep.subr.mxu0 0.0
      %1231 = vmatpush2.msra.mxu0 0.0
      %1232 = vmatprep.subr.mxu0 0.0
      %1233 = vmatpush2.msra.mxu0 0.0
      %1234 = vmatprep.subr.mxu0 0.0
      %1235 = vmatpush2.msra.mxu0 0.0
      %1236 = vmatprep.subr.mxu0 0.0
      %1237 = vmatpush2.msra.mxu0 0.0
      %1238 = vmatprep.subr.mxu0 0.0
      %1239 = vmatpush2.msra.mxu0 0.0
      %1240 = vmatprep.subr.mxu0 0.0
      %1241 = vmatpush2.msra.mxu0 0.0
      %1242 = vmatprep.mubr.f32.mxu0 0.0
      %1243 = vmatmul.mubr.f32.gmra.mxu0 %v1175
      %v1244 = vpop.f32.mrf.mxu0
      %v1245 = vadd.f32 0.0, %v1244
      %v1246 = vpop.f32.mrf.mxu0
      %1247 = vdwg.mxu0
      %v1248 = vadd.f32 %v1177, %v1245
      %v1249 = vtanh.pop %v1248
      %1250 = vst [vmem:[#allocation9] sm:$0xff] %v1249
    $region25: #{tpu_custom_call.1} parent=1 // pred_fallthru
      _
    // Predicated region
    $region26: #{tpu_custom_call.1} parent=1 // pred_check
      _
    $region27: #{tpu_custom_call.1} parent=1 // pred_check_branch
      %1252 = sbr.rel (0) target = $region29
    $region28: #{tpu_custom_call.1} parent=1 // pred_region
      %s1254 = ssub.s32 128, 128
      %1255 = vsyncadd [#allocation6], %s1254
      %s1257 = sshll.u32 [#allocation9], 4
      %s1258 = int_to_ptr.vmem [resolvable:$true] %s1257
      %1260 = dma.vmem_to_hbm [thread:$0]  %s1258, 128, %s3, [#allocation6]
    $region29: #{tpu_custom_call.1} parent=1 // pred_fallthru
      _
    // Predicated region
    $region30: #{tpu_custom_call.1} parent=1 // pred_check
      _
    $region31: #{tpu_custom_call.1} parent=1 // pred_check_branch
      %1262 = sbr.rel (0) target = $region33
    $region32: #{tpu_custom_call.1} parent=1 // pred_region
      %1263 = dma.done [#allocation6], 128
    $region33: #{tpu_custom_call.1} parent=1 // pred_fallthru
      _
    %1264 = vsyncpa [#allocation5], 1
    %1265 = vsyncpa [#allocation8], 1
    %1266 = vsyncpa [#allocation6], 1

</llo_original>
